<compile_context>
chip_gen: v6e
topology: v6e:2x2x1
jax: 0.10.0
libtpu: 0.0.40
codegen_flags: <defaults>
</compile_context>

<pallas_src>
import functools

import jax
import jax.numpy as jnp
import numpy as np
from jax.experimental import pallas as pl
from jax.experimental.pallas import tpu as pltpu


# ----------------------------- kernel ----------------------------------------

def _multi_rational(z, num_ref, den_ref):
    """alpha-folded mixture of 5 Pade(5,4) rational activations (version A).

    num_ref: SMEM f32[30] = (alpha[r] * num[r, j]) flattened (alpha folded in).
    den_ref: SMEM f32[20] = |den[r, j]| flattened (abs precomputed).
    z is lane-dense (C, H*W); the math is purely elementwise.
    """
    x1 = z
    x2 = x1 * x1
    x3 = x2 * x1
    x4 = x2 * x2
    x5 = x4 * x1
    a1 = jnp.abs(x1)
    a3 = a1 * x2            # |x|^3 ; |x|^2 == x2 and |x|^4 == x4 (even powers)
    out = None
    for r in range(5):      # static unroll over the 5 expert rationals
        p = (num_ref[6 * r + 0]
             + num_ref[6 * r + 1] * x1 + num_ref[6 * r + 2] * x2
             + num_ref[6 * r + 3] * x3 + num_ref[6 * r + 4] * x4
             + num_ref[6 * r + 5] * x5)
        q = (1.0 + den_ref[4 * r + 0] * a1 + den_ref[4 * r + 1] * x2
             + den_ref[4 * r + 2] * a3 + den_ref[4 * r + 3] * x4)
        term = p * pl.reciprocal(q, approx=True)   # q >= 1, well conditioned
        out = term if out is None else out + term
    return out


def _fused_block_kernel(x_ref, w1_ref, b1_ref, w2_ref, b2_ref,
                        num1_ref, den1_ref, num2_ref, den2_ref,
                        out_ref, col_ref, *, H, W):
    """Whole RationalBasicBlock for one image, channel-major lane-dense."""
    C = x_ref.shape[1]                 # Cin == Cout (identity shortcut)
    M = H * W
    x = x_ref[0]                       # (C, M) f32, kept f32 for the shortcut

    # Boundary masks for the implicit zero padding (built once, shared by both
    # convs).  Flattened pixel index m = h*W + w lives in the lane dim.
    lane = jax.lax.broadcasted_iota(jnp.int32, (C, M), 1)
    col = jnp.bitwise_and(lane, W - 1) if (W & (W - 1)) == 0 else lane % W
    row_ok_m1 = lane >= W              # h >= 1      (needed when dh == -1)
    row_ok_p1 = lane < (H - 1) * W     # h <= H - 2  (needed when dh == +1)
    col_ok_m1 = col >= 1               # w >= 1      (needed when dw == -1)
    col_ok_p1 = col <= W - 2           # w <= W - 2  (needed when dw == +1)

    def shifted_tap(a, dh, dw):
        """y[c, h*W + w] = a[c, (h+dh)*W + (w+dw)] with zero padding."""
        s = dh * W + dw
        y = a if s == 0 else pltpu.roll(a, shift=(-s) % M, axis=1)
        cond = None
        for ok in ((row_ok_m1 if dh == -1 else None),
                   (row_ok_p1 if dh == 1 else None),
                   (col_ok_m1 if dw == -1 else None),
                   (col_ok_p1 if dw == 1 else None)):
            if ok is not None:
                cond = ok if cond is None else jnp.logical_and(cond, ok)
        return y if cond is None else jnp.where(cond, y, 0.0)

    def conv3x3(a, w_ref_):
        """Single-matmul 3x3 conv: (Cout, 9C) @ im2col(9C, M) -> (Cout, M)."""
        for kh in range(3):
            for kw in range(3):
                t = kh * 3 + kw
                col_ref[t * C:(t + 1) * C, :] = shifted_tap(a, kh - 1, kw - 1)
        return jnp.dot(w_ref_[...], col_ref[...].astype(jnp.bfloat16),
                       preferred_element_type=jnp.float32)

    # conv1 (3x3, stride 1, pad 1) + folded BN1 + rational mixture 1
    h1 = _multi_rational(conv3x3(x, w1_ref) + b1_ref[...], num1_ref, den1_ref)

    # conv2 + folded BN2 + identity shortcut (exact f32) + rational mixture 2
    z2 = conv3x3(h1, w2_ref) + b2_ref[...] + x
    out_ref[0] = _multi_rational(z2, num2_ref, den2_ref)


# ----------------------------- JAX glue --------------------------------------

def _bn_fold(gamma, beta, mean, var, eps=1e-5):
    """Eval-mode BatchNorm folded into per-channel scale/bias."""
    scale = gamma / jnp.sqrt(var + eps)
    bias = beta - mean * scale
    return scale, bias


def _fold_conv_bn(w_oihw, scale):
    """PyTorch conv weight [Cout, Cin, 3, 3] -> (Cout, 9*Cin) with columns
    ordered (kh, kw, ci), BN scale folded into output channels, cast to bf16."""
    co, ci = w_oihw.shape[0], w_oihw.shape[1]
    w = jnp.transpose(w_oihw, (0, 2, 3, 1)).reshape(co, 9 * ci)
    return (w * scale[:, None]).astype(jnp.bfloat16)


def rational_basic_block_forward(x_nchw, p):
    """Forward pass of RationalBasicBlock (stride=1, downsample=False)."""
    n, c, h, w = x_nchw.shape
    cout = p["w1"].shape[0]
    assert c == cout, "identity shortcut requires planes_in == planes_out"
    m = h * w
    assert m % 128 == 0, "H*W must be a multiple of 128 for the lane-dense layout"
    # TODO(synk): pad the flattened spatial dim when H*W is not a lane multiple.

    # Channel-major lane-dense layout: NCHW -> (N, C, H*W) is a free reshape.
    x_cm = x_nchw.reshape(n, c, m).astype(jnp.float32)

    scale1, bias1 = _bn_fold(p["bn1_gamma"], p["bn1_beta"], p["bn1_mean"], p["bn1_var"])
    scale2, bias2 = _bn_fold(p["bn2_gamma"], p["bn2_beta"], p["bn2_mean"], p["bn2_var"])
    w1m = _fold_conv_bn(p["w1"], scale1)
    w2m = _fold_conv_bn(p["w2"], scale2)
    b1 = bias1.reshape(cout, 1).astype(jnp.float32)
    b2 = bias2.reshape(cout, 1).astype(jnp.float32)

    # Fold alpha into the numerators; precompute |den|; flatten for 1-D SMEM.
    num1 = (p["alpha"][:, None] * p["rat_num_1"]).reshape(-1)
    den1 = jnp.abs(p["rat_den_1"]).reshape(-1)
    num2 = (p["alpha_2"][:, None] * p["rat_num_2"]).reshape(-1)
    den2 = jnp.abs(p["rat_den_2"]).reshape(-1)

    m_total = n * m
    cost = pl.CostEstimate(
        flops=2 * m_total * 9 * (c * cout + cout * cout) + 120 * m_total * cout,
        transcendentals=10 * m_total * cout,
        bytes_accessed=4 * (x_cm.size + m_total * cout) + 2 * (w1m.size + w2m.size),
    )

    smem = pl.BlockSpec(memory_space=pltpu.MemorySpace.SMEM)
    kernel = functools.partial(_fused_block_kernel, H=h, W=w)
    out = pl.pallas_call(
        kernel,
        out_shape=jax.ShapeDtypeStruct((n, cout, m), jnp.float32),
        grid=(n,),
        in_specs=[
            pl.BlockSpec((1, c, m), lambda i: (i, 0, 0)),        # x (channel-major)
            pl.BlockSpec((cout, 9 * c), lambda i: (0, 0)),       # w1 (BN folded, bf16)
            pl.BlockSpec((cout, 1), lambda i: (0, 0)),           # bias1
            pl.BlockSpec((cout, 9 * cout), lambda i: (0, 0)),    # w2 (BN folded, bf16)
            pl.BlockSpec((cout, 1), lambda i: (0, 0)),           # bias2
            smem, smem, smem, smem,                              # rational tables
        ],
        out_specs=pl.BlockSpec((1, cout, m), lambda i: (i, 0, 0)),
        scratch_shapes=[pltpu.VMEM((9 * c, m), jnp.float32)],    # im2col slab (reused)
        compiler_params=pltpu.CompilerParams(dimension_semantics=("parallel",)),
        cost_estimate=cost,
    )(x_cm, w1m, b1, w2m, b2, num1, den1, num2, den2)

    return out.reshape(n, cout, h, w)   # free reshape back to NCHW (no transpose)


# --------------------------- pure-JAX reference -------------------------------

def _im2col_3x3(x_nhwc):
    n, h, w, c = x_nhwc.shape
    xp = jnp.pad(x_nhwc, ((0, 0), (1, 1), (1, 1), (0, 0)))
    cols = [xp[:, dh:dh + h, dw:dw + w, :] for dh in range(3) for dw in range(3)]
    return jnp.concatenate(cols, axis=-1).reshape(n * h * w, 9 * c)


def _conv_weight_to_matrix(w_oihw):
    return jnp.transpose(w_oihw, (2, 3, 1, 0)).reshape(-1, w_oihw.shape[0])


def _multi_rational_ref(z, num, den, alpha):
    x1 = z
    x2 = x1 * x1
    x3 = x2 * x1
    x4 = x3 * x1
    x5 = x4 * x1
    a1, a2, a3, a4 = jnp.abs(x1), jnp.abs(x2), jnp.abs(x3), jnp.abs(x4)
    out = jnp.zeros_like(z)
    for r in range(5):
        p = (num[r, 0] + num[r, 1] * x1 + num[r, 2] * x2
             + num[r, 3] * x3 + num[r, 4] * x4 + num[r, 5] * x5)
        q = (1.0 + jnp.abs(den[r, 0]) * a1 + jnp.abs(den[r, 1]) * a2
             + jnp.abs(den[r, 2]) * a3 + jnp.abs(den[r, 3]) * a4)
        out = out + alpha[r] * (p / q)
    return out


def reference_forward(x_nchw, p):
    """Pure-JAX reference of RationalBasicBlock.forward (eval-mode BN).
    Conv matmul operands are cast to bf16 to mirror the kernel's MXU input
    precision; rational mixtures use exact division and unfolded alpha."""
    n, c, h, w = x_nchw.shape
    cout = p["w1"].shape[0]
    m = n * h * w
    x = jnp.transpose(x_nchw, (0, 2, 3, 1)).astype(jnp.float32)

    s1, b1 = _bn_fold(p["bn1_gamma"], p["bn1_beta"], p["bn1_mean"], p["bn1_var"])
    w1_mat = (_conv_weight_to_matrix(p["w1"]) * s1).astype(jnp.bfloat16)
    y1 = jnp.dot(_im2col_3x3(x).astype(jnp.bfloat16), w1_mat,
                 preferred_element_type=jnp.float32) + b1[None, :]
    h1 = _multi_rational_ref(y1, p["rat_num_1"], p["rat_den_1"], p["alpha"])

    s2, b2 = _bn_fold(p["bn2_gamma"], p["bn2_beta"], p["bn2_mean"], p["bn2_var"])
    w2_mat = (_conv_weight_to_matrix(p["w2"]) * s2).astype(jnp.bfloat16)
    y2 = jnp.dot(_im2col_3x3(h1.reshape(n, h, w, cout)).astype(jnp.bfloat16), w2_mat,
                 preferred_element_type=jnp.float32) + b2[None, :]
    y2 = y2 + x.reshape(m, c)                       # identity shortcut (f32)
    out = _multi_rational_ref(y2, p["rat_num_2"], p["rat_den_2"], p["alpha_2"])
    return jnp.transpose(out.reshape(n, h, w, cout), (0, 3, 1, 2))


# ------------------------------ parameter init --------------------------------

def init_params(key, planes_in=4, planes_out=4):
    ks = jax.random.split(key, 20)

    def conv_init(k, co, ci):
        fan_in = ci * 9
        return jax.random.normal(k, (co, ci, 3, 3), jnp.float32) / np.sqrt(fan_in)

    def bn_init(k, ch):
        k1, k2, k3, k4 = jax.random.split(k, 4)
        return dict(
            gamma=jax.random.uniform(k1, (ch,), jnp.float32, 0.5, 1.5),
            beta=0.1 * jax.random.normal(k2, (ch,), jnp.float32),
            mean=0.1 * jax.random.normal(k3, (ch,), jnp.float32),
            var=jax.random.uniform(k4, (ch,), jnp.float32, 0.5, 1.5),
        )

    def rational_group_init(k):
        # TODO(synk): the rational_activations library initializes the Pade(5,4)
        # coefficients from constants fitted to leaky_relu/sigmoid/gelu/tanh/swish;
        # here we use synthetic coefficients of the same shapes with per-degree
        # decaying magnitudes (mimicking those well-conditioned fitted functions).
        k1, k2 = jax.random.split(k)
        num_scale = jnp.array([0.5, 0.5, 0.2, 0.08, 0.02, 0.005], jnp.float32)
        den_scale = jnp.array([0.3, 0.2, 0.08, 0.02], jnp.float32)
        num = jax.random.normal(k1, (5, 6), jnp.float32) * num_scale
        den = jax.random.normal(k2, (5, 4), jnp.float32) * den_scale
        return num, den

    def alpha_init(k):
        a = jax.random.uniform(k, (5,), jnp.float32)
        return a / a.sum()

    bn1 = bn_init(ks[2], planes_out)
    bn2 = bn_init(ks[3], planes_out)
    num1, den1 = rational_group_init(ks[4])
    num2, den2 = rational_group_init(ks[5])

    return dict(
        w1=conv_init(ks[0], planes_out, planes_in),
        w2=conv_init(ks[1], planes_out, planes_out),
        bn1_gamma=bn1["gamma"], bn1_beta=bn1["beta"],
        bn1_mean=bn1["mean"], bn1_var=bn1["var"],
        bn2_gamma=bn2["gamma"], bn2_beta=bn2["beta"],
        bn2_mean=bn2["mean"], bn2_var=bn2["var"],
        rat_num_1=num1, rat_den_1=den1,
        rat_num_2=num2, rat_den_2=den2,
        alpha=alpha_init(ks[6]),
        alpha_2=alpha_init(ks[7]),
    )


# ---------------------------------- main --------------------------------------

if __name__ == "__main__":
    key = jax.random.PRNGKey(0)
    kx, kp = jax.random.split(key)

    # planes_in = planes_out = 4, stride = 1, downsample = False
    x = jax.random.normal(kx, (2, 4, 16, 16), jnp.float32)  # NCHW, like PyTorch
    params = init_params(kp, planes_in=4, planes_out=4)

    out = jax.jit(rational_basic_block_forward)(x, params)
    out = jax.block_until_ready(out)
    assert out.shape == (2, 4, 16, 16) and out.dtype == jnp.float32

    ref = reference_forward(x, params)
    # Tolerance accounts for the kernel's approx EUP reciprocal and bf16
    # matmul-operand rounding; any semantic bug would be O(1) off.
    np.testing.assert_allclose(np.asarray(out), np.asarray(ref),
                               rtol=2e-2, atol=2e-2)
    print("KERNEL_OK")
</pallas_src>

<mosaic_0001>
module attributes {stable_mosaic.version = 11 : i64} {
  func.func @_fused_block_kernel(%arg0: i32, %arg1: memref<1x4x256xf32, #tpu.memory_space<vmem>>, %arg2: memref<4x36xbf16, #tpu.memory_space<vmem>>, %arg3: memref<4x1xf32, #tpu.memory_space<vmem>>, %arg4: memref<4x36xbf16, #tpu.memory_space<vmem>>, %arg5: memref<4x1xf32, #tpu.memory_space<vmem>>, %arg6: memref<30xf32, #tpu.memory_space<smem>>, %arg7: memref<20xf32, #tpu.memory_space<smem>>, %arg8: memref<30xf32, #tpu.memory_space<smem>>, %arg9: memref<20xf32, #tpu.memory_space<smem>>, %arg10: memref<1x4x256xf32, #tpu.memory_space<vmem>>, %arg11: memref<36x256xf32, #tpu.memory_space<vmem>>) attributes {dimension_semantics = [#tpu.dimension_semantics<parallel>], iteration_bounds = array<i64: 2>, scalar_prefetch = 0 : i64, scratch_operands = 1 : i64, tpu.core_type = #tpu.core_type<tc>, window_params = [{transform_indices = @transform_0, window_bounds = array<i64: 1, 4, 256>}, {pipeline_mode = #tpu.pipeline_mode<synchronous>, transform_indices = @transform_1, window_bounds = array<i64: 4, 36>}, {pipeline_mode = #tpu.pipeline_mode<synchronous>, transform_indices = @transform_2, window_bounds = array<i64: 4, 1>}, {pipeline_mode = #tpu.pipeline_mode<synchronous>, transform_indices = @transform_3, window_bounds = array<i64: 4, 36>}, {pipeline_mode = #tpu.pipeline_mode<synchronous>, transform_indices = @transform_4, window_bounds = array<i64: 4, 1>}, {transform_indices = @transform_5, window_bounds = array<i64: 30>}, {transform_indices = @transform_6, window_bounds = array<i64: 20>}, {transform_indices = @transform_7, window_bounds = array<i64: 30>}, {transform_indices = @transform_8, window_bounds = array<i64: 20>}, {transform_indices = @transform_9, window_bounds = array<i64: 1, 4, 256>}]} {
    %c0 = arith.constant 0 : index
    %c0_0 = arith.constant 0 : index
    %c0_1 = arith.constant 0 : index
    %0 = vector.load %arg1[%c0, %c0_0, %c0_1] : memref<1x4x256xf32, #tpu.memory_space<vmem>>, vector<1x4x256xf32>
    %1 = vector.shape_cast %0 : vector<1x4x256xf32> to vector<4x256xf32>
    %2 = tpu.iota {dimensions = array<i32: 1>} : vector<4x256xi32>
    %c15_i32 = arith.constant 15 : i32
    %3 = vector.broadcast %c15_i32 : i32 to vector<4x256xi32>
    %4 = arith.andi %2, %3 : vector<4x256xi32>
    %c16_i32 = arith.constant 16 : i32
    %5 = vector.broadcast %c16_i32 : i32 to vector<4x256xi32>
    %6 = arith.cmpi sge, %2, %5 : vector<4x256xi32>
    %c240_i32 = arith.constant 240 : i32
    %7 = vector.broadcast %c240_i32 : i32 to vector<4x256xi32>
    %8 = arith.cmpi slt, %2, %7 : vector<4x256xi32>
    %c1_i32 = arith.constant 1 : i32
    %9 = vector.broadcast %c1_i32 : i32 to vector<4x256xi32>
    %10 = arith.cmpi sge, %4, %9 : vector<4x256xi32>
    %c14_i32 = arith.constant 14 : i32
    %11 = vector.broadcast %c14_i32 : i32 to vector<4x256xi32>
    %12 = arith.cmpi sle, %4, %11 : vector<4x256xi32>
    %c17_i32 = arith.constant 17 : i32
    %13 = tpu.dynamic_rotate %1 by %c17_i32 dim 1 : vector<4x256xf32>, i32 -> vector<4x256xf32>
    %14 = arith.andi %6, %10 : vector<4x256xi1>
    %cst = arith.constant 0.000000e+00 : f32
    %15 = vector.broadcast %cst : f32 to vector<4x256xf32>
    %16 = arith.select %14, %13, %15 : vector<4x256xi1>, vector<4x256xf32>
    %c0_2 = arith.constant 0 : index
    %c0_3 = arith.constant 0 : index
    %17 = vector.load %arg11[%c0_2, %c0_3] : memref<36x256xf32, #tpu.memory_space<vmem>>, vector<4x256xf32>
    tpu.vector_store %arg11[%c0_2, %c0_3], %16 {strides = array<i32>} : memref<36x256xf32, #tpu.memory_space<vmem>>, vector<4x256xf32>,
    %c16_i32_4 = arith.constant 16 : i32
    %18 = tpu.dynamic_rotate %1 by %c16_i32_4 dim 1 : vector<4x256xf32>, i32 -> vector<4x256xf32>
    %cst_5 = arith.constant 0.000000e+00 : f32
    %19 = vector.broadcast %cst_5 : f32 to vector<4x256xf32>
    %20 = arith.select %6, %18, %19 : vector<4x256xi1>, vector<4x256xf32>
    %c4 = arith.constant 4 : index
    %c0_6 = arith.constant 0 : index
    %21 = vector.load %arg11[%c4, %c0_6] : memref<36x256xf32, #tpu.memory_space<vmem>>, vector<4x256xf32>
    tpu.vector_store %arg11[%c4, %c0_6], %20 {strides = array<i32>} : memref<36x256xf32, #tpu.memory_space<vmem>>, vector<4x256xf32>,
    %c15_i32_7 = arith.constant 15 : i32
    %22 = tpu.dynamic_rotate %1 by %c15_i32_7 dim 1 : vector<4x256xf32>, i32 -> vector<4x256xf32>
    %23 = arith.andi %6, %12 : vector<4x256xi1>
    %cst_8 = arith.constant 0.000000e+00 : f32
    %24 = vector.broadcast %cst_8 : f32 to vector<4x256xf32>
    %25 = arith.select %23, %22, %24 : vector<4x256xi1>, vector<4x256xf32>
    %c8 = arith.constant 8 : index
    %c0_9 = arith.constant 0 : index
    %26 = vector.load %arg11[%c8, %c0_9] : memref<36x256xf32, #tpu.memory_space<vmem>>, vector<4x256xf32>
    tpu.vector_store %arg11[%c8, %c0_9], %25 {strides = array<i32>} : memref<36x256xf32, #tpu.memory_space<vmem>>, vector<4x256xf32>,
    %c1_i32_10 = arith.constant 1 : i32
    %27 = tpu.dynamic_rotate %1 by %c1_i32_10 dim 1 : vector<4x256xf32>, i32 -> vector<4x256xf32>
    %cst_11 = arith.constant 0.000000e+00 : f32
    %28 = vector.broadcast %cst_11 : f32 to vector<4x256xf32>
    %29 = arith.select %10, %27, %28 : vector<4x256xi1>, vector<4x256xf32>
    %c12 = arith.constant 12 : index
    %c0_12 = arith.constant 0 : index
    %30 = vector.load %arg11[%c12, %c0_12] : memref<36x256xf32, #tpu.memory_space<vmem>>, vector<4x256xf32>
    tpu.vector_store %arg11[%c12, %c0_12], %29 {strides = array<i32>} : memref<36x256xf32, #tpu.memory_space<vmem>>, vector<4x256xf32>,
    %c16 = arith.constant 16 : index
    %c0_13 = arith.constant 0 : index
    %31 = vector.load %arg11[%c16, %c0_13] : memref<36x256xf32, #tpu.memory_space<vmem>>, vector<4x256xf32>
    tpu.vector_store %arg11[%c16, %c0_13], %1 {strides = array<i32>} : memref<36x256xf32, #tpu.memory_space<vmem>>, vector<4x256xf32>,
    %c255_i32 = arith.constant 255 : i32
    %32 = tpu.dynamic_rotate %1 by %c255_i32 dim 1 : vector<4x256xf32>, i32 -> vector<4x256xf32>
    %cst_14 = arith.constant 0.000000e+00 : f32
    %33 = vector.broadcast %cst_14 : f32 to vector<4x256xf32>
    %34 = arith.select %12, %32, %33 : vector<4x256xi1>, vector<4x256xf32>
    %c20 = arith.constant 20 : index
    %c0_15 = arith.constant 0 : index
    %35 = vector.load %arg11[%c20, %c0_15] : memref<36x256xf32, #tpu.memory_space<vmem>>, vector<4x256xf32>
    tpu.vector_store %arg11[%c20, %c0_15], %34 {strides = array<i32>} : memref<36x256xf32, #tpu.memory_space<vmem>>, vector<4x256xf32>,
    %c241_i32 = arith.constant 241 : i32
    %36 = tpu.dynamic_rotate %1 by %c241_i32 dim 1 : vector<4x256xf32>, i32 -> vector<4x256xf32>
    %37 = arith.andi %8, %10 : vector<4x256xi1>
    %cst_16 = arith.constant 0.000000e+00 : f32
    %38 = vector.broadcast %cst_16 : f32 to vector<4x256xf32>
    %39 = arith.select %37, %36, %38 : vector<4x256xi1>, vector<4x256xf32>
    %c24 = arith.constant 24 : index
    %c0_17 = arith.constant 0 : index
    %40 = vector.load %arg11[%c24, %c0_17] : memref<36x256xf32, #tpu.memory_space<vmem>>, vector<4x256xf32>
    tpu.vector_store %arg11[%c24, %c0_17], %39 {strides = array<i32>} : memref<36x256xf32, #tpu.memory_space<vmem>>, vector<4x256xf32>,
    %c240_i32_18 = arith.constant 240 : i32
    %41 = tpu.dynamic_rotate %1 by %c240_i32_18 dim 1 : vector<4x256xf32>, i32 -> vector<4x256xf32>
    %cst_19 = arith.constant 0.000000e+00 : f32
    %42 = vector.broadcast %cst_19 : f32 to vector<4x256xf32>
    %43 = arith.select %8, %41, %42 : vector<4x256xi1>, vector<4x256xf32>
    %c28 = arith.constant 28 : index
    %c0_20 = arith.constant 0 : index
    %44 = vector.load %arg11[%c28, %c0_20] : memref<36x256xf32, #tpu.memory_space<vmem>>, vector<4x256xf32>
    tpu.vector_store %arg11[%c28, %c0_20], %43 {strides = array<i32>} : memref<36x256xf32, #tpu.memory_space<vmem>>, vector<4x256xf32>,
    %c239_i32 = arith.constant 239 : i32
    %45 = tpu.dynamic_rotate %1 by %c239_i32 dim 1 : vector<4x256xf32>, i32 -> vector<4x256xf32>
    %46 = arith.andi %8, %12 : vector<4x256xi1>
    %cst_21 = arith.constant 0.000000e+00 : f32
    %47 = vector.broadcast %cst_21 : f32 to vector<4x256xf32>
    %48 = arith.select %46, %45, %47 : vector<4x256xi1>, vector<4x256xf32>
    %c32 = arith.constant 32 : index
    %c0_22 = arith.constant 0 : index
    %49 = vector.load %arg11[%c32, %c0_22] : memref<36x256xf32, #tpu.memory_space<vmem>>, vector<4x256xf32>
    tpu.vector_store %arg11[%c32, %c0_22], %48 {strides = array<i32>} : memref<36x256xf32, #tpu.memory_space<vmem>>, vector<4x256xf32>,
    %c0_23 = arith.constant 0 : index
    %c0_24 = arith.constant 0 : index
    %50 = vector.load %arg2[%c0_23, %c0_24] : memref<4x36xbf16, #tpu.memory_space<vmem>>, vector<4x36xbf16>
    %c0_25 = arith.constant 0 : index
    %c0_26 = arith.constant 0 : index
    %51 = vector.load %arg11[%c0_25, %c0_26] : memref<36x256xf32, #tpu.memory_space<vmem>>, vector<36x256xf32>
    %52 = arith.truncf %51 : vector<36x256xf32> to vector<36x256xbf16>
    %cst_27 = arith.constant dense<0.000000e+00> : vector<4x256xf32>
    %53 = tpu.matmul %50, %52, %cst_27 {dimension_numbers = #tpu.dot_dimension_numbers<[1], [0], [0], [1], [0, 0, 1, 1], [], []>} : vector<4x36xbf16>, vector<36x256xbf16>, vector<4x256xf32> -> vector<4x256xf32>
    %c0_28 = arith.constant 0 : index
    %c0_29 = arith.constant 0 : index
    %54 = vector.load %arg3[%c0_28, %c0_29] : memref<4x1xf32, #tpu.memory_space<vmem>>, vector<4x1xf32>
    %55 = vector.broadcast %54 : vector<4x1xf32> to vector<4x256xf32>
    %56 = arith.addf %53, %55 : vector<4x256xf32>
    %57 = arith.mulf %56, %56 : vector<4x256xf32>
    %58 = arith.mulf %57, %56 : vector<4x256xf32>
    %59 = arith.mulf %57, %57 : vector<4x256xf32>
    %60 = arith.mulf %59, %56 : vector<4x256xf32>
    %61 = math.absf %56 : vector<4x256xf32>
    %62 = arith.mulf %61, %57 : vector<4x256xf32>
    %c0_30 = arith.constant 0 : index
    %63 = memref.load %arg6[%c0_30] : memref<30xf32, #tpu.memory_space<smem>>
    %c1 = arith.constant 1 : index
    %64 = memref.load %arg6[%c1] : memref<30xf32, #tpu.memory_space<smem>>
    %65 = vector.broadcast %64 : f32 to vector<4x256xf32>
    %66 = arith.mulf %65, %56 : vector<4x256xf32>
    %67 = vector.broadcast %63 : f32 to vector<4x256xf32>
    %68 = arith.addf %67, %66 : vector<4x256xf32>
    %c2 = arith.constant 2 : index
    %69 = memref.load %arg6[%c2] : memref<30xf32, #tpu.memory_space<smem>>
    %70 = vector.broadcast %69 : f32 to vector<4x256xf32>
    %71 = arith.mulf %70, %57 : vector<4x256xf32>
    %72 = arith.addf %68, %71 : vector<4x256xf32>
    %c3 = arith.constant 3 : index
    %73 = memref.load %arg6[%c3] : memref<30xf32, #tpu.memory_space<smem>>
    %74 = vector.broadcast %73 : f32 to vector<4x256xf32>
    %75 = arith.mulf %74, %58 : vector<4x256xf32>
    %76 = arith.addf %72, %75 : vector<4x256xf32>
    %c4_31 = arith.constant 4 : index
    %77 = memref.load %arg6[%c4_31] : memref<30xf32, #tpu.memory_space<smem>>
    %78 = vector.broadcast %77 : f32 to vector<4x256xf32>
    %79 = arith.mulf %78, %59 : vector<4x256xf32>
    %80 = arith.addf %76, %79 : vector<4x256xf32>
    %c5 = arith.constant 5 : index
    %81 = memref.load %arg6[%c5] : memref<30xf32, #tpu.memory_space<smem>>
    %82 = vector.broadcast %81 : f32 to vector<4x256xf32>
    %83 = arith.mulf %82, %60 : vector<4x256xf32>
    %84 = arith.addf %80, %83 : vector<4x256xf32>
    %c0_32 = arith.constant 0 : index
    %85 = memref.load %arg7[%c0_32] : memref<20xf32, #tpu.memory_space<smem>>
    %86 = vector.broadcast %85 : f32 to vector<4x256xf32>
    %87 = arith.mulf %86, %61 : vector<4x256xf32>
    %cst_33 = arith.constant 1.000000e+00 : f32
    %88 = vector.broadcast %cst_33 : f32 to vector<4x256xf32>
    %89 = arith.addf %88, %87 : vector<4x256xf32>
    %c1_34 = arith.constant 1 : index
    %90 = memref.load %arg7[%c1_34] : memref<20xf32, #tpu.memory_space<smem>>
    %91 = vector.broadcast %90 : f32 to vector<4x256xf32>
    %92 = arith.mulf %91, %57 : vector<4x256xf32>
    %93 = arith.addf %89, %92 : vector<4x256xf32>
    %c2_35 = arith.constant 2 : index
    %94 = memref.load %arg7[%c2_35] : memref<20xf32, #tpu.memory_space<smem>>
    %95 = vector.broadcast %94 : f32 to vector<4x256xf32>
    %96 = arith.mulf %95, %62 : vector<4x256xf32>
    %97 = arith.addf %93, %96 : vector<4x256xf32>
    %c3_36 = arith.constant 3 : index
    %98 = memref.load %arg7[%c3_36] : memref<20xf32, #tpu.memory_space<smem>>
    %99 = vector.broadcast %98 : f32 to vector<4x256xf32>
    %100 = arith.mulf %99, %59 : vector<4x256xf32>
    %101 = arith.addf %97, %100 : vector<4x256xf32>
    %102 = tpu.reciprocal %101 {approx = true} : vector<4x256xf32> -> vector<4x256xf32>
    %103 = arith.mulf %84, %102 : vector<4x256xf32>
    %c6 = arith.constant 6 : index
    %104 = memref.load %arg6[%c6] : memref<30xf32, #tpu.memory_space<smem>>
    %c7 = arith.constant 7 : index
    %105 = memref.load %arg6[%c7] : memref<30xf32, #tpu.memory_space<smem>>
    %106 = vector.broadcast %105 : f32 to vector<4x256xf32>
    %107 = arith.mulf %106, %56 : vector<4x256xf32>
    %108 = vector.broadcast %104 : f32 to vector<4x256xf32>
    %109 = arith.addf %108, %107 : vector<4x256xf32>
    %c8_37 = arith.constant 8 : index
    %110 = memref.load %arg6[%c8_37] : memref<30xf32, #tpu.memory_space<smem>>
    %111 = vector.broadcast %110 : f32 to vector<4x256xf32>
    %112 = arith.mulf %111, %57 : vector<4x256xf32>
    %113 = arith.addf %109, %112 : vector<4x256xf32>
    %c9 = arith.constant 9 : index
    %114 = memref.load %arg6[%c9] : memref<30xf32, #tpu.memory_space<smem>>
    %115 = vector.broadcast %114 : f32 to vector<4x256xf32>
    %116 = arith.mulf %115, %58 : vector<4x256xf32>
    %117 = arith.addf %113, %116 : vector<4x256xf32>
    %c10 = arith.constant 10 : index
    %118 = memref.load %arg6[%c10] : memref<30xf32, #tpu.memory_space<smem>>
    %119 = vector.broadcast %118 : f32 to vector<4x256xf32>
    %120 = arith.mulf %119, %59 : vector<4x256xf32>
    %121 = arith.addf %117, %120 : vector<4x256xf32>
    %c11 = arith.constant 11 : index
    %122 = memref.load %arg6[%c11] : memref<30xf32, #tpu.memory_space<smem>>
    %123 = vector.broadcast %122 : f32 to vector<4x256xf32>
    %124 = arith.mulf %123, %60 : vector<4x256xf32>
    %125 = arith.addf %121, %124 : vector<4x256xf32>
    %c4_38 = arith.constant 4 : index
    %126 = memref.load %arg7[%c4_38] : memref<20xf32, #tpu.memory_space<smem>>
    %127 = vector.broadcast %126 : f32 to vector<4x256xf32>
    %128 = arith.mulf %127, %61 : vector<4x256xf32>
    %cst_39 = arith.constant 1.000000e+00 : f32
    %129 = vector.broadcast %cst_39 : f32 to vector<4x256xf32>
    %130 = arith.addf %129, %128 : vector<4x256xf32>
    %c5_40 = arith.constant 5 : index
    %131 = memref.load %arg7[%c5_40] : memref<20xf32, #tpu.memory_space<smem>>
    %132 = vector.broadcast %131 : f32 to vector<4x256xf32>
    %133 = arith.mulf %132, %57 : vector<4x256xf32>
    %134 = arith.addf %130, %133 : vector<4x256xf32>
    %c6_41 = arith.constant 6 : index
    %135 = memref.load %arg7[%c6_41] : memref<20xf32, #tpu.memory_space<smem>>
    %136 = vector.broadcast %135 : f32 to vector<4x256xf32>
    %137 = arith.mulf %136, %62 : vector<4x256xf32>
    %138 = arith.addf %134, %137 : vector<4x256xf32>
    %c7_42 = arith.constant 7 : index
    %139 = memref.load %arg7[%c7_42] : memref<20xf32, #tpu.memory_space<smem>>
    %140 = vector.broadcast %139 : f32 to vector<4x256xf32>
    %141 = arith.mulf %140, %59 : vector<4x256xf32>
    %142 = arith.addf %138, %141 : vector<4x256xf32>
    %143 = tpu.reciprocal %142 {approx = true} : vector<4x256xf32> -> vector<4x256xf32>
    %144 = arith.mulf %125, %143 : vector<4x256xf32>
    %145 = arith.addf %103, %144 : vector<4x256xf32>
    %c12_43 = arith.constant 12 : index
    %146 = memref.load %arg6[%c12_43] : memref<30xf32, #tpu.memory_space<smem>>
    %c13 = arith.constant 13 : index
    %147 = memref.load %arg6[%c13] : memref<30xf32, #tpu.memory_space<smem>>
    %148 = vector.broadcast %147 : f32 to vector<4x256xf32>
    %149 = arith.mulf %148, %56 : vector<4x256xf32>
    %150 = vector.broadcast %146 : f32 to vector<4x256xf32>
    %151 = arith.addf %150, %149 : vector<4x256xf32>
    %c14 = arith.constant 14 : index
    %152 = memref.load %arg6[%c14] : memref<30xf32, #tpu.memory_space<smem>>
    %153 = vector.broadcast %152 : f32 to vector<4x256xf32>
    %154 = arith.mulf %153, %57 : vector<4x256xf32>
    %155 = arith.addf %151, %154 : vector<4x256xf32>
    %c15 = arith.constant 15 : index
    %156 = memref.load %arg6[%c15] : memref<30xf32, #tpu.memory_space<smem>>
    %157 = vector.broadcast %156 : f32 to vector<4x256xf32>
    %158 = arith.mulf %157, %58 : vector<4x256xf32>
    %159 = arith.addf %155, %158 : vector<4x256xf32>
    %c16_44 = arith.constant 16 : index
    %160 = memref.load %arg6[%c16_44] : memref<30xf32, #tpu.memory_space<smem>>
    %161 = vector.broadcast %160 : f32 to vector<4x256xf32>
    %162 = arith.mulf %161, %59 : vector<4x256xf32>
    %163 = arith.addf %159, %162 : vector<4x256xf32>
    %c17 = arith.constant 17 : index
    %164 = memref.load %arg6[%c17] : memref<30xf32, #tpu.memory_space<smem>>
    %165 = vector.broadcast %164 : f32 to vector<4x256xf32>
    %166 = arith.mulf %165, %60 : vector<4x256xf32>
    %167 = arith.addf %163, %166 : vector<4x256xf32>
    %c8_45 = arith.constant 8 : index
    %168 = memref.load %arg7[%c8_45] : memref<20xf32, #tpu.memory_space<smem>>
    %169 = vector.broadcast %168 : f32 to vector<4x256xf32>
    %170 = arith.mulf %169, %61 : vector<4x256xf32>
    %cst_46 = arith.constant 1.000000e+00 : f32
    %171 = vector.broadcast %cst_46 : f32 to vector<4x256xf32>
    %172 = arith.addf %171, %170 : vector<4x256xf32>
    %c9_47 = arith.constant 9 : index
    %173 = memref.load %arg7[%c9_47] : memref<20xf32, #tpu.memory_space<smem>>
    %174 = vector.broadcast %173 : f32 to vector<4x256xf32>
    %175 = arith.mulf %174, %57 : vector<4x256xf32>
    %176 = arith.addf %172, %175 : vector<4x256xf32>
    %c10_48 = arith.constant 10 : index
    %177 = memref.load %arg7[%c10_48] : memref<20xf32, #tpu.memory_space<smem>>
    %178 = vector.broadcast %177 : f32 to vector<4x256xf32>
    %179 = arith.mulf %178, %62 : vector<4x256xf32>
    %180 = arith.addf %176, %179 : vector<4x256xf32>
    %c11_49 = arith.constant 11 : index
    %181 = memref.load %arg7[%c11_49] : memref<20xf32, #tpu.memory_space<smem>>
    %182 = vector.broadcast %181 : f32 to vector<4x256xf32>
    %183 = arith.mulf %182, %59 : vector<4x256xf32>
    %184 = arith.addf %180, %183 : vector<4x256xf32>
    %185 = tpu.reciprocal %184 {approx = true} : vector<4x256xf32> -> vector<4x256xf32>
    %186 = arith.mulf %167, %185 : vector<4x256xf32>
    %187 = arith.addf %145, %186 : vector<4x256xf32>
    %c18 = arith.constant 18 : index
    %188 = memref.load %arg6[%c18] : memref<30xf32, #tpu.memory_space<smem>>
    %c19 = arith.constant 19 : index
    %189 = memref.load %arg6[%c19] : memref<30xf32, #tpu.memory_space<smem>>
    %190 = vector.broadcast %189 : f32 to vector<4x256xf32>
    %191 = arith.mulf %190, %56 : vector<4x256xf32>
    %192 = vector.broadcast %188 : f32 to vector<4x256xf32>
    %193 = arith.addf %192, %191 : vector<4x256xf32>
    %c20_50 = arith.constant 20 : index
    %194 = memref.load %arg6[%c20_50] : memref<30xf32, #tpu.memory_space<smem>>
    %195 = vector.broadcast %194 : f32 to vector<4x256xf32>
    %196 = arith.mulf %195, %57 : vector<4x256xf32>
    %197 = arith.addf %193, %196 : vector<4x256xf32>
    %c21 = arith.constant 21 : index
    %198 = memref.load %arg6[%c21] : memref<30xf32, #tpu.memory_space<smem>>
    %199 = vector.broadcast %198 : f32 to vector<4x256xf32>
    %200 = arith.mulf %199, %58 : vector<4x256xf32>
    %201 = arith.addf %197, %200 : vector<4x256xf32>
    %c22 = arith.constant 22 : index
    %202 = memref.load %arg6[%c22] : memref<30xf32, #tpu.memory_space<smem>>
    %203 = vector.broadcast %202 : f32 to vector<4x256xf32>
    %204 = arith.mulf %203, %59 : vector<4x256xf32>
    %205 = arith.addf %201, %204 : vector<4x256xf32>
    %c23 = arith.constant 23 : index
    %206 = memref.load %arg6[%c23] : memref<30xf32, #tpu.memory_space<smem>>
    %207 = vector.broadcast %206 : f32 to vector<4x256xf32>
    %208 = arith.mulf %207, %60 : vector<4x256xf32>
    %209 = arith.addf %205, %208 : vector<4x256xf32>
    %c12_51 = arith.constant 12 : index
    %210 = memref.load %arg7[%c12_51] : memref<20xf32, #tpu.memory_space<smem>>
    %211 = vector.broadcast %210 : f32 to vector<4x256xf32>
    %212 = arith.mulf %211, %61 : vector<4x256xf32>
    %cst_52 = arith.constant 1.000000e+00 : f32
    %213 = vector.broadcast %cst_52 : f32 to vector<4x256xf32>
    %214 = arith.addf %213, %212 : vector<4x256xf32>
    %c13_53 = arith.constant 13 : index
    %215 = memref.load %arg7[%c13_53] : memref<20xf32, #tpu.memory_space<smem>>
    %216 = vector.broadcast %215 : f32 to vector<4x256xf32>
    %217 = arith.mulf %216, %57 : vector<4x256xf32>
    %218 = arith.addf %214, %217 : vector<4x256xf32>
    %c14_54 = arith.constant 14 : index
    %219 = memref.load %arg7[%c14_54] : memref<20xf32, #tpu.memory_space<smem>>
    %220 = vector.broadcast %219 : f32 to vector<4x256xf32>
    %221 = arith.mulf %220, %62 : vector<4x256xf32>
    %222 = arith.addf %218, %221 : vector<4x256xf32>
    %c15_55 = arith.constant 15 : index
    %223 = memref.load %arg7[%c15_55] : memref<20xf32, #tpu.memory_space<smem>>
    %224 = vector.broadcast %223 : f32 to vector<4x256xf32>
    %225 = arith.mulf %224, %59 : vector<4x256xf32>
    %226 = arith.addf %222, %225 : vector<4x256xf32>
    %227 = tpu.reciprocal %226 {approx = true} : vector<4x256xf32> -> vector<4x256xf32>
    %228 = arith.mulf %209, %227 : vector<4x256xf32>
    %229 = arith.addf %187, %228 : vector<4x256xf32>
    %c24_56 = arith.constant 24 : index
    %230 = memref.load %arg6[%c24_56] : memref<30xf32, #tpu.memory_space<smem>>
    %c25 = arith.constant 25 : index
    %231 = memref.load %arg6[%c25] : memref<30xf32, #tpu.memory_space<smem>>
    %232 = vector.broadcast %231 : f32 to vector<4x256xf32>
    %233 = arith.mulf %232, %56 : vector<4x256xf32>
    %234 = vector.broadcast %230 : f32 to vector<4x256xf32>
    %235 = arith.addf %234, %233 : vector<4x256xf32>
    %c26 = arith.constant 26 : index
    %236 = memref.load %arg6[%c26] : memref<30xf32, #tpu.memory_space<smem>>
    %237 = vector.broadcast %236 : f32 to vector<4x256xf32>
    %238 = arith.mulf %237, %57 : vector<4x256xf32>
    %239 = arith.addf %235, %238 : vector<4x256xf32>
    %c27 = arith.constant 27 : index
    %240 = memref.load %arg6[%c27] : memref<30xf32, #tpu.memory_space<smem>>
    %241 = vector.broadcast %240 : f32 to vector<4x256xf32>
    %242 = arith.mulf %241, %58 : vector<4x256xf32>
    %243 = arith.addf %239, %242 : vector<4x256xf32>
    %c28_57 = arith.constant 28 : index
    %244 = memref.load %arg6[%c28_57] : memref<30xf32, #tpu.memory_space<smem>>
    %245 = vector.broadcast %244 : f32 to vector<4x256xf32>
    %246 = arith.mulf %245, %59 : vector<4x256xf32>
    %247 = arith.addf %243, %246 : vector<4x256xf32>
    %c29 = arith.constant 29 : index
    %248 = memref.load %arg6[%c29] : memref<30xf32, #tpu.memory_space<smem>>
    %249 = vector.broadcast %248 : f32 to vector<4x256xf32>
    %250 = arith.mulf %249, %60 : vector<4x256xf32>
    %251 = arith.addf %247, %250 : vector<4x256xf32>
    %c16_58 = arith.constant 16 : index
    %252 = memref.load %arg7[%c16_58] : memref<20xf32, #tpu.memory_space<smem>>
    %253 = vector.broadcast %252 : f32 to vector<4x256xf32>
    %254 = arith.mulf %253, %61 : vector<4x256xf32>
    %cst_59 = arith.constant 1.000000e+00 : f32
    %255 = vector.broadcast %cst_59 : f32 to vector<4x256xf32>
    %256 = arith.addf %255, %254 : vector<4x256xf32>
    %c17_60 = arith.constant 17 : index
    %257 = memref.load %arg7[%c17_60] : memref<20xf32, #tpu.memory_space<smem>>
    %258 = vector.broadcast %257 : f32 to vector<4x256xf32>
    %259 = arith.mulf %258, %57 : vector<4x256xf32>
    %260 = arith.addf %256, %259 : vector<4x256xf32>
    %c18_61 = arith.constant 18 : index
    %261 = memref.load %arg7[%c18_61] : memref<20xf32, #tpu.memory_space<smem>>
    %262 = vector.broadcast %261 : f32 to vector<4x256xf32>
    %263 = arith.mulf %262, %62 : vector<4x256xf32>
    %264 = arith.addf %260, %263 : vector<4x256xf32>
    %c19_62 = arith.constant 19 : index
    %265 = memref.load %arg7[%c19_62] : memref<20xf32, #tpu.memory_space<smem>>
    %266 = vector.broadcast %265 : f32 to vector<4x256xf32>
    %267 = arith.mulf %266, %59 : vector<4x256xf32>
    %268 = arith.addf %264, %267 : vector<4x256xf32>
    %269 = tpu.reciprocal %268 {approx = true} : vector<4x256xf32> -> vector<4x256xf32>
    %270 = arith.mulf %251, %269 : vector<4x256xf32>
    %271 = arith.addf %229, %270 : vector<4x256xf32>
    %c17_i32_63 = arith.constant 17 : i32
    %272 = tpu.dynamic_rotate %271 by %c17_i32_63 dim 1 : vector<4x256xf32>, i32 -> vector<4x256xf32>
    %273 = arith.andi %6, %10 : vector<4x256xi1>
    %cst_64 = arith.constant 0.000000e+00 : f32
    %274 = vector.broadcast %cst_64 : f32 to vector<4x256xf32>
    %275 = arith.select %273, %272, %274 : vector<4x256xi1>, vector<4x256xf32>
    %c0_65 = arith.constant 0 : index
    %c0_66 = arith.constant 0 : index
    %276 = vector.load %arg11[%c0_65, %c0_66] : memref<36x256xf32, #tpu.memory_space<vmem>>, vector<4x256xf32>
    tpu.vector_store %arg11[%c0_65, %c0_66], %275 {strides = array<i32>} : memref<36x256xf32, #tpu.memory_space<vmem>>, vector<4x256xf32>,
    %c16_i32_67 = arith.constant 16 : i32
    %277 = tpu.dynamic_rotate %271 by %c16_i32_67 dim 1 : vector<4x256xf32>, i32 -> vector<4x256xf32>
    %cst_68 = arith.constant 0.000000e+00 : f32
    %278 = vector.broadcast %cst_68 : f32 to vector<4x256xf32>
    %279 = arith.select %6, %277, %278 : vector<4x256xi1>, vector<4x256xf32>
    %c4_69 = arith.constant 4 : index
    %c0_70 = arith.constant 0 : index
    %280 = vector.load %arg11[%c4_69, %c0_70] : memref<36x256xf32, #tpu.memory_space<vmem>>, vector<4x256xf32>
    tpu.vector_store %arg11[%c4_69, %c0_70], %279 {strides = array<i32>} : memref<36x256xf32, #tpu.memory_space<vmem>>, vector<4x256xf32>,
    %c15_i32_71 = arith.constant 15 : i32
    %281 = tpu.dynamic_rotate %271 by %c15_i32_71 dim 1 : vector<4x256xf32>, i32 -> vector<4x256xf32>
    %282 = arith.andi %6, %12 : vector<4x256xi1>
    %cst_72 = arith.constant 0.000000e+00 : f32
    %283 = vector.broadcast %cst_72 : f32 to vector<4x256xf32>
    %284 = arith.select %282, %281, %283 : vector<4x256xi1>, vector<4x256xf32>
    %c8_73 = arith.constant 8 : index
    %c0_74 = arith.constant 0 : index
    %285 = vector.load %arg11[%c8_73, %c0_74] : memref<36x256xf32, #tpu.memory_space<vmem>>, vector<4x256xf32>
    tpu.vector_store %arg11[%c8_73, %c0_74], %284 {strides = array<i32>} : memref<36x256xf32, #tpu.memory_space<vmem>>, vector<4x256xf32>,
    %c1_i32_75 = arith.constant 1 : i32
    %286 = tpu.dynamic_rotate %271 by %c1_i32_75 dim 1 : vector<4x256xf32>, i32 -> vector<4x256xf32>
    %cst_76 = arith.constant 0.000000e+00 : f32
    %287 = vector.broadcast %cst_76 : f32 to vector<4x256xf32>
    %288 = arith.select %10, %286, %287 : vector<4x256xi1>, vector<4x256xf32>
    %c12_77 = arith.constant 12 : index
    %c0_78 = arith.constant 0 : index
    %289 = vector.load %arg11[%c12_77, %c0_78] : memref<36x256xf32, #tpu.memory_space<vmem>>, vector<4x256xf32>
    tpu.vector_store %arg11[%c12_77, %c0_78], %288 {strides = array<i32>} : memref<36x256xf32, #tpu.memory_space<vmem>>, vector<4x256xf32>,
    %c16_79 = arith.constant 16 : index
    %c0_80 = arith.constant 0 : index
    %290 = vector.load %arg11[%c16_79, %c0_80] : memref<36x256xf32, #tpu.memory_space<vmem>>, vector<4x256xf32>
    tpu.vector_store %arg11[%c16_79, %c0_80], %271 {strides = array<i32>} : memref<36x256xf32, #tpu.memory_space<vmem>>, vector<4x256xf32>,
    %c255_i32_81 = arith.constant 255 : i32
    %291 = tpu.dynamic_rotate %271 by %c255_i32_81 dim 1 : vector<4x256xf32>, i32 -> vector<4x256xf32>
    %cst_82 = arith.constant 0.000000e+00 : f32
    %292 = vector.broadcast %cst_82 : f32 to vector<4x256xf32>
    %293 = arith.select %12, %291, %292 : vector<4x256xi1>, vector<4x256xf32>
    %c20_83 = arith.constant 20 : index
    %c0_84 = arith.constant 0 : index
    %294 = vector.load %arg11[%c20_83, %c0_84] : memref<36x256xf32, #tpu.memory_space<vmem>>, vector<4x256xf32>
    tpu.vector_store %arg11[%c20_83, %c0_84], %293 {strides = array<i32>} : memref<36x256xf32, #tpu.memory_space<vmem>>, vector<4x256xf32>,
    %c241_i32_85 = arith.constant 241 : i32
    %295 = tpu.dynamic_rotate %271 by %c241_i32_85 dim 1 : vector<4x256xf32>, i32 -> vector<4x256xf32>
    %296 = arith.andi %8, %10 : vector<4x256xi1>
    %cst_86 = arith.constant 0.000000e+00 : f32
    %297 = vector.broadcast %cst_86 : f32 to vector<4x256xf32>
    %298 = arith.select %296, %295, %297 : vector<4x256xi1>, vector<4x256xf32>
    %c24_87 = arith.constant 24 : index
    %c0_88 = arith.constant 0 : index
    %299 = vector.load %arg11[%c24_87, %c0_88] : memref<36x256xf32, #tpu.memory_space<vmem>>, vector<4x256xf32>
    tpu.vector_store %arg11[%c24_87, %c0_88], %298 {strides = array<i32>} : memref<36x256xf32, #tpu.memory_space<vmem>>, vector<4x256xf32>,
    %c240_i32_89 = arith.constant 240 : i32
    %300 = tpu.dynamic_rotate %271 by %c240_i32_89 dim 1 : vector<4x256xf32>, i32 -> vector<4x256xf32>
    %cst_90 = arith.constant 0.000000e+00 : f32
    %301 = vector.broadcast %cst_90 : f32 to vector<4x256xf32>
    %302 = arith.select %8, %300, %301 : vector<4x256xi1>, vector<4x256xf32>
    %c28_91 = arith.constant 28 : index
    %c0_92 = arith.constant 0 : index
    %303 = vector.load %arg11[%c28_91, %c0_92] : memref<36x256xf32, #tpu.memory_space<vmem>>, vector<4x256xf32>
    tpu.vector_store %arg11[%c28_91, %c0_92], %302 {strides = array<i32>} : memref<36x256xf32, #tpu.memory_space<vmem>>, vector<4x256xf32>,
    %c239_i32_93 = arith.constant 239 : i32
    %304 = tpu.dynamic_rotate %271 by %c239_i32_93 dim 1 : vector<4x256xf32>, i32 -> vector<4x256xf32>
    %305 = arith.andi %8, %12 : vector<4x256xi1>
    %cst_94 = arith.constant 0.000000e+00 : f32
    %306 = vector.broadcast %cst_94 : f32 to vector<4x256xf32>
    %307 = arith.select %305, %304, %306 : vector<4x256xi1>, vector<4x256xf32>
    %c32_95 = arith.constant 32 : index
    %c0_96 = arith.constant 0 : index
    %308 = vector.load %arg11[%c32_95, %c0_96] : memref<36x256xf32, #tpu.memory_space<vmem>>, vector<4x256xf32>
    tpu.vector_store %arg11[%c32_95, %c0_96], %307 {strides = array<i32>} : memref<36x256xf32, #tpu.memory_space<vmem>>, vector<4x256xf32>,
    %c0_97 = arith.constant 0 : index
    %c0_98 = arith.constant 0 : index
    %309 = vector.load %arg4[%c0_97, %c0_98] : memref<4x36xbf16, #tpu.memory_space<vmem>>, vector<4x36xbf16>
    %c0_99 = arith.constant 0 : index
    %c0_100 = arith.constant 0 : index
    %310 = vector.load %arg11[%c0_99, %c0_100] : memref<36x256xf32, #tpu.memory_space<vmem>>, vector<36x256xf32>
    %311 = arith.truncf %310 : vector<36x256xf32> to vector<36x256xbf16>
    %cst_101 = arith.constant dense<0.000000e+00> : vector<4x256xf32>
    %312 = tpu.matmul %309, %311, %cst_101 {dimension_numbers = #tpu.dot_dimension_numbers<[1], [0], [0], [1], [0, 0, 1, 1], [], []>} : vector<4x36xbf16>, vector<36x256xbf16>, vector<4x256xf32> -> vector<4x256xf32>
    %c0_102 = arith.constant 0 : index
    %c0_103 = arith.constant 0 : index
    %313 = vector.load %arg5[%c0_102, %c0_103] : memref<4x1xf32, #tpu.memory_space<vmem>>, vector<4x1xf32>
    %314 = vector.broadcast %313 : vector<4x1xf32> to vector<4x256xf32>
    %315 = arith.addf %312, %314 : vector<4x256xf32>
    %316 = arith.addf %315, %1 : vector<4x256xf32>
    %317 = arith.mulf %316, %316 : vector<4x256xf32>
    %318 = arith.mulf %317, %316 : vector<4x256xf32>
    %319 = arith.mulf %317, %317 : vector<4x256xf32>
    %320 = arith.mulf %319, %316 : vector<4x256xf32>
    %321 = math.absf %316 : vector<4x256xf32>
    %322 = arith.mulf %321, %317 : vector<4x256xf32>
    %c0_104 = arith.constant 0 : index
    %323 = memref.load %arg8[%c0_104] : memref<30xf32, #tpu.memory_space<smem>>
    %c1_105 = arith.constant 1 : index
    %324 = memref.load %arg8[%c1_105] : memref<30xf32, #tpu.memory_space<smem>>
    %325 = vector.broadcast %324 : f32 to vector<4x256xf32>
    %326 = arith.mulf %325, %316 : vector<4x256xf32>
    %327 = vector.broadcast %323 : f32 to vector<4x256xf32>
    %328 = arith.addf %327, %326 : vector<4x256xf32>
    %c2_106 = arith.constant 2 : index
    %329 = memref.load %arg8[%c2_106] : memref<30xf32, #tpu.memory_space<smem>>
    %330 = vector.broadcast %329 : f32 to vector<4x256xf32>
    %331 = arith.mulf %330, %317 : vector<4x256xf32>
    %332 = arith.addf %328, %331 : vector<4x256xf32>
    %c3_107 = arith.constant 3 : index
    %333 = memref.load %arg8[%c3_107] : memref<30xf32, #tpu.memory_space<smem>>
    %334 = vector.broadcast %333 : f32 to vector<4x256xf32>
    %335 = arith.mulf %334, %318 : vector<4x256xf32>
    %336 = arith.addf %332, %335 : vector<4x256xf32>
    %c4_108 = arith.constant 4 : index
    %337 = memref.load %arg8[%c4_108] : memref<30xf32, #tpu.memory_space<smem>>
    %338 = vector.broadcast %337 : f32 to vector<4x256xf32>
    %339 = arith.mulf %338, %319 : vector<4x256xf32>
    %340 = arith.addf %336, %339 : vector<4x256xf32>
    %c5_109 = arith.constant 5 : index
    %341 = memref.load %arg8[%c5_109] : memref<30xf32, #tpu.memory_space<smem>>
    %342 = vector.broadcast %341 : f32 to vector<4x256xf32>
    %343 = arith.mulf %342, %320 : vector<4x256xf32>
    %344 = arith.addf %340, %343 : vector<4x256xf32>
    %c0_110 = arith.constant 0 : index
    %345 = memref.load %arg9[%c0_110] : memref<20xf32, #tpu.memory_space<smem>>
    %346 = vector.broadcast %345 : f32 to vector<4x256xf32>
    %347 = arith.mulf %346, %321 : vector<4x256xf32>
    %cst_111 = arith.constant 1.000000e+00 : f32
    %348 = vector.broadcast %cst_111 : f32 to vector<4x256xf32>
    %349 = arith.addf %348, %347 : vector<4x256xf32>
    %c1_112 = arith.constant 1 : index
    %350 = memref.load %arg9[%c1_112] : memref<20xf32, #tpu.memory_space<smem>>
    %351 = vector.broadcast %350 : f32 to vector<4x256xf32>
    %352 = arith.mulf %351, %317 : vector<4x256xf32>
    %353 = arith.addf %349, %352 : vector<4x256xf32>
    %c2_113 = arith.constant 2 : index
    %354 = memref.load %arg9[%c2_113] : memref<20xf32, #tpu.memory_space<smem>>
    %355 = vector.broadcast %354 : f32 to vector<4x256xf32>
    %356 = arith.mulf %355, %322 : vector<4x256xf32>
    %357 = arith.addf %353, %356 : vector<4x256xf32>
    %c3_114 = arith.constant 3 : index
    %358 = memref.load %arg9[%c3_114] : memref<20xf32, #tpu.memory_space<smem>>
    %359 = vector.broadcast %358 : f32 to vector<4x256xf32>
    %360 = arith.mulf %359, %319 : vector<4x256xf32>
    %361 = arith.addf %357, %360 : vector<4x256xf32>
    %362 = tpu.reciprocal %361 {approx = true} : vector<4x256xf32> -> vector<4x256xf32>
    %363 = arith.mulf %344, %362 : vector<4x256xf32>
    %c6_115 = arith.constant 6 : index
    %364 = memref.load %arg8[%c6_115] : memref<30xf32, #tpu.memory_space<smem>>
    %c7_116 = arith.constant 7 : index
    %365 = memref.load %arg8[%c7_116] : memref<30xf32, #tpu.memory_space<smem>>
    %366 = vector.broadcast %365 : f32 to vector<4x256xf32>
    %367 = arith.mulf %366, %316 : vector<4x256xf32>
    %368 = vector.broadcast %364 : f32 to vector<4x256xf32>
    %369 = arith.addf %368, %367 : vector<4x256xf32>
    %c8_117 = arith.constant 8 : index
    %370 = memref.load %arg8[%c8_117] : memref<30xf32, #tpu.memory_space<smem>>
    %371 = vector.broadcast %370 : f32 to vector<4x256xf32>
    %372 = arith.mulf %371, %317 : vector<4x256xf32>
    %373 = arith.addf %369, %372 : vector<4x256xf32>
    %c9_118 = arith.constant 9 : index
    %374 = memref.load %arg8[%c9_118] : memref<30xf32, #tpu.memory_space<smem>>
    %375 = vector.broadcast %374 : f32 to vector<4x256xf32>
    %376 = arith.mulf %375, %318 : vector<4x256xf32>
    %377 = arith.addf %373, %376 : vector<4x256xf32>
    %c10_119 = arith.constant 10 : index
    %378 = memref.load %arg8[%c10_119] : memref<30xf32, #tpu.memory_space<smem>>
    %379 = vector.broadcast %378 : f32 to vector<4x256xf32>
    %380 = arith.mulf %379, %319 : vector<4x256xf32>
    %381 = arith.addf %377, %380 : vector<4x256xf32>
    %c11_120 = arith.constant 11 : index
    %382 = memref.load %arg8[%c11_120] : memref<30xf32, #tpu.memory_space<smem>>
    %383 = vector.broadcast %382 : f32 to vector<4x256xf32>
    %384 = arith.mulf %383, %320 : vector<4x256xf32>
    %385 = arith.addf %381, %384 : vector<4x256xf32>
    %c4_121 = arith.constant 4 : index
    %386 = memref.load %arg9[%c4_121] : memref<20xf32, #tpu.memory_space<smem>>
    %387 = vector.broadcast %386 : f32 to vector<4x256xf32>
    %388 = arith.mulf %387, %321 : vector<4x256xf32>
    %cst_122 = arith.constant 1.000000e+00 : f32
    %389 = vector.broadcast %cst_122 : f32 to vector<4x256xf32>
    %390 = arith.addf %389, %388 : vector<4x256xf32>
    %c5_123 = arith.constant 5 : index
    %391 = memref.load %arg9[%c5_123] : memref<20xf32, #tpu.memory_space<smem>>
    %392 = vector.broadcast %391 : f32 to vector<4x256xf32>
    %393 = arith.mulf %392, %317 : vector<4x256xf32>
    %394 = arith.addf %390, %393 : vector<4x256xf32>
    %c6_124 = arith.constant 6 : index
    %395 = memref.load %arg9[%c6_124] : memref<20xf32, #tpu.memory_space<smem>>
    %396 = vector.broadcast %395 : f32 to vector<4x256xf32>
    %397 = arith.mulf %396, %322 : vector<4x256xf32>
    %398 = arith.addf %394, %397 : vector<4x256xf32>
    %c7_125 = arith.constant 7 : index
    %399 = memref.load %arg9[%c7_125] : memref<20xf32, #tpu.memory_space<smem>>
    %400 = vector.broadcast %399 : f32 to vector<4x256xf32>
    %401 = arith.mulf %400, %319 : vector<4x256xf32>
    %402 = arith.addf %398, %401 : vector<4x256xf32>
    %403 = tpu.reciprocal %402 {approx = true} : vector<4x256xf32> -> vector<4x256xf32>
    %404 = arith.mulf %385, %403 : vector<4x256xf32>
    %405 = arith.addf %363, %404 : vector<4x256xf32>
    %c12_126 = arith.constant 12 : index
    %406 = memref.load %arg8[%c12_126] : memref<30xf32, #tpu.memory_space<smem>>
    %c13_127 = arith.constant 13 : index
    %407 = memref.load %arg8[%c13_127] : memref<30xf32, #tpu.memory_space<smem>>
    %408 = vector.broadcast %407 : f32 to vector<4x256xf32>
    %409 = arith.mulf %408, %316 : vector<4x256xf32>
    %410 = vector.broadcast %406 : f32 to vector<4x256xf32>
    %411 = arith.addf %410, %409 : vector<4x256xf32>
    %c14_128 = arith.constant 14 : index
    %412 = memref.load %arg8[%c14_128] : memref<30xf32, #tpu.memory_space<smem>>
    %413 = vector.broadcast %412 : f32 to vector<4x256xf32>
    %414 = arith.mulf %413, %317 : vector<4x256xf32>
    %415 = arith.addf %411, %414 : vector<4x256xf32>
    %c15_129 = arith.constant 15 : index
    %416 = memref.load %arg8[%c15_129] : memref<30xf32, #tpu.memory_space<smem>>
    %417 = vector.broadcast %416 : f32 to vector<4x256xf32>
    %418 = arith.mulf %417, %318 : vector<4x256xf32>
    %419 = arith.addf %415, %418 : vector<4x256xf32>
    %c16_130 = arith.constant 16 : index
    %420 = memref.load %arg8[%c16_130] : memref<30xf32, #tpu.memory_space<smem>>
    %421 = vector.broadcast %420 : f32 to vector<4x256xf32>
    %422 = arith.mulf %421, %319 : vector<4x256xf32>
    %423 = arith.addf %419, %422 : vector<4x256xf32>
    %c17_131 = arith.constant 17 : index
    %424 = memref.load %arg8[%c17_131] : memref<30xf32, #tpu.memory_space<smem>>
    %425 = vector.broadcast %424 : f32 to vector<4x256xf32>
    %426 = arith.mulf %425, %320 : vector<4x256xf32>
    %427 = arith.addf %423, %426 : vector<4x256xf32>
    %c8_132 = arith.constant 8 : index
    %428 = memref.load %arg9[%c8_132] : memref<20xf32, #tpu.memory_space<smem>>
    %429 = vector.broadcast %428 : f32 to vector<4x256xf32>
    %430 = arith.mulf %429, %321 : vector<4x256xf32>
    %cst_133 = arith.constant 1.000000e+00 : f32
    %431 = vector.broadcast %cst_133 : f32 to vector<4x256xf32>
    %432 = arith.addf %431, %430 : vector<4x256xf32>
    %c9_134 = arith.constant 9 : index
    %433 = memref.load %arg9[%c9_134] : memref<20xf32, #tpu.memory_space<smem>>
    %434 = vector.broadcast %433 : f32 to vector<4x256xf32>
    %435 = arith.mulf %434, %317 : vector<4x256xf32>
    %436 = arith.addf %432, %435 : vector<4x256xf32>
    %c10_135 = arith.constant 10 : index
    %437 = memref.load %arg9[%c10_135] : memref<20xf32, #tpu.memory_space<smem>>
    %438 = vector.broadcast %437 : f32 to vector<4x256xf32>
    %439 = arith.mulf %438, %322 : vector<4x256xf32>
    %440 = arith.addf %436, %439 : vector<4x256xf32>
    %c11_136 = arith.constant 11 : index
    %441 = memref.load %arg9[%c11_136] : memref<20xf32, #tpu.memory_space<smem>>
    %442 = vector.broadcast %441 : f32 to vector<4x256xf32>
    %443 = arith.mulf %442, %319 : vector<4x256xf32>
    %444 = arith.addf %440, %443 : vector<4x256xf32>
    %445 = tpu.reciprocal %444 {approx = true} : vector<4x256xf32> -> vector<4x256xf32>
    %446 = arith.mulf %427, %445 : vector<4x256xf32>
    %447 = arith.addf %405, %446 : vector<4x256xf32>
    %c18_137 = arith.constant 18 : index
    %448 = memref.load %arg8[%c18_137] : memref<30xf32, #tpu.memory_space<smem>>
    %c19_138 = arith.constant 19 : index
    %449 = memref.load %arg8[%c19_138] : memref<30xf32, #tpu.memory_space<smem>>
    %450 = vector.broadcast %449 : f32 to vector<4x256xf32>
    %451 = arith.mulf %450, %316 : vector<4x256xf32>
    %452 = vector.broadcast %448 : f32 to vector<4x256xf32>
    %453 = arith.addf %452, %451 : vector<4x256xf32>
    %c20_139 = arith.constant 20 : index
    %454 = memref.load %arg8[%c20_139] : memref<30xf32, #tpu.memory_space<smem>>
    %455 = vector.broadcast %454 : f32 to vector<4x256xf32>
    %456 = arith.mulf %455, %317 : vector<4x256xf32>
    %457 = arith.addf %453, %456 : vector<4x256xf32>
    %c21_140 = arith.constant 21 : index
    %458 = memref.load %arg8[%c21_140] : memref<30xf32, #tpu.memory_space<smem>>
    %459 = vector.broadcast %458 : f32 to vector<4x256xf32>
    %460 = arith.mulf %459, %318 : vector<4x256xf32>
    %461 = arith.addf %457, %460 : vector<4x256xf32>
    %c22_141 = arith.constant 22 : index
    %462 = memref.load %arg8[%c22_141] : memref<30xf32, #tpu.memory_space<smem>>
    %463 = vector.broadcast %462 : f32 to vector<4x256xf32>
    %464 = arith.mulf %463, %319 : vector<4x256xf32>
    %465 = arith.addf %461, %464 : vector<4x256xf32>
    %c23_142 = arith.constant 23 : index
    %466 = memref.load %arg8[%c23_142] : memref<30xf32, #tpu.memory_space<smem>>
    %467 = vector.broadcast %466 : f32 to vector<4x256xf32>
    %468 = arith.mulf %467, %320 : vector<4x256xf32>
    %469 = arith.addf %465, %468 : vector<4x256xf32>
    %c12_143 = arith.constant 12 : index
    %470 = memref.load %arg9[%c12_143] : memref<20xf32, #tpu.memory_space<smem>>
    %471 = vector.broadcast %470 : f32 to vector<4x256xf32>
    %472 = arith.mulf %471, %321 : vector<4x256xf32>
    %cst_144 = arith.constant 1.000000e+00 : f32
    %473 = vector.broadcast %cst_144 : f32 to vector<4x256xf32>
    %474 = arith.addf %473, %472 : vector<4x256xf32>
    %c13_145 = arith.constant 13 : index
    %475 = memref.load %arg9[%c13_145] : memref<20xf32, #tpu.memory_space<smem>>
    %476 = vector.broadcast %475 : f32 to vector<4x256xf32>
    %477 = arith.mulf %476, %317 : vector<4x256xf32>
    %478 = arith.addf %474, %477 : vector<4x256xf32>
    %c14_146 = arith.constant 14 : index
    %479 = memref.load %arg9[%c14_146] : memref<20xf32, #tpu.memory_space<smem>>
    %480 = vector.broadcast %479 : f32 to vector<4x256xf32>
    %481 = arith.mulf %480, %322 : vector<4x256xf32>
    %482 = arith.addf %478, %481 : vector<4x256xf32>
    %c15_147 = arith.constant 15 : index
    %483 = memref.load %arg9[%c15_147] : memref<20xf32, #tpu.memory_space<smem>>
    %484 = vector.broadcast %483 : f32 to vector<4x256xf32>
    %485 = arith.mulf %484, %319 : vector<4x256xf32>
    %486 = arith.addf %482, %485 : vector<4x256xf32>
    %487 = tpu.reciprocal %486 {approx = true} : vector<4x256xf32> -> vector<4x256xf32>
    %488 = arith.mulf %469, %487 : vector<4x256xf32>
    %489 = arith.addf %447, %488 : vector<4x256xf32>
    %c24_148 = arith.constant 24 : index
    %490 = memref.load %arg8[%c24_148] : memref<30xf32, #tpu.memory_space<smem>>
    %c25_149 = arith.constant 25 : index
    %491 = memref.load %arg8[%c25_149] : memref<30xf32, #tpu.memory_space<smem>>
    %492 = vector.broadcast %491 : f32 to vector<4x256xf32>
    %493 = arith.mulf %492, %316 : vector<4x256xf32>
    %494 = vector.broadcast %490 : f32 to vector<4x256xf32>
    %495 = arith.addf %494, %493 : vector<4x256xf32>
    %c26_150 = arith.constant 26 : index
    %496 = memref.load %arg8[%c26_150] : memref<30xf32, #tpu.memory_space<smem>>
    %497 = vector.broadcast %496 : f32 to vector<4x256xf32>
    %498 = arith.mulf %497, %317 : vector<4x256xf32>
    %499 = arith.addf %495, %498 : vector<4x256xf32>
    %c27_151 = arith.constant 27 : index
    %500 = memref.load %arg8[%c27_151] : memref<30xf32, #tpu.memory_space<smem>>
    %501 = vector.broadcast %500 : f32 to vector<4x256xf32>
    %502 = arith.mulf %501, %318 : vector<4x256xf32>
    %503 = arith.addf %499, %502 : vector<4x256xf32>
    %c28_152 = arith.constant 28 : index
    %504 = memref.load %arg8[%c28_152] : memref<30xf32, #tpu.memory_space<smem>>
    %505 = vector.broadcast %504 : f32 to vector<4x256xf32>
    %506 = arith.mulf %505, %319 : vector<4x256xf32>
    %507 = arith.addf %503, %506 : vector<4x256xf32>
    %c29_153 = arith.constant 29 : index
    %508 = memref.load %arg8[%c29_153] : memref<30xf32, #tpu.memory_space<smem>>
    %509 = vector.broadcast %508 : f32 to vector<4x256xf32>
    %510 = arith.mulf %509, %320 : vector<4x256xf32>
    %511 = arith.addf %507, %510 : vector<4x256xf32>
    %c16_154 = arith.constant 16 : index
    %512 = memref.load %arg9[%c16_154] : memref<20xf32, #tpu.memory_space<smem>>
    %513 = vector.broadcast %512 : f32 to vector<4x256xf32>
    %514 = arith.mulf %513, %321 : vector<4x256xf32>
    %cst_155 = arith.constant 1.000000e+00 : f32
    %515 = vector.broadcast %cst_155 : f32 to vector<4x256xf32>
    %516 = arith.addf %515, %514 : vector<4x256xf32>
    %c17_156 = arith.constant 17 : index
    %517 = memref.load %arg9[%c17_156] : memref<20xf32, #tpu.memory_space<smem>>
    %518 = vector.broadcast %517 : f32 to vector<4x256xf32>
    %519 = arith.mulf %518, %317 : vector<4x256xf32>
    %520 = arith.addf %516, %519 : vector<4x256xf32>
    %c18_157 = arith.constant 18 : index
    %521 = memref.load %arg9[%c18_157] : memref<20xf32, #tpu.memory_space<smem>>
    %522 = vector.broadcast %521 : f32 to vector<4x256xf32>
    %523 = arith.mulf %522, %322 : vector<4x256xf32>
    %524 = arith.addf %520, %523 : vector<4x256xf32>
    %c19_158 = arith.constant 19 : index
    %525 = memref.load %arg9[%c19_158] : memref<20xf32, #tpu.memory_space<smem>>
    %526 = vector.broadcast %525 : f32 to vector<4x256xf32>
    %527 = arith.mulf %526, %319 : vector<4x256xf32>
    %528 = arith.addf %524, %527 : vector<4x256xf32>
    %529 = tpu.reciprocal %528 {approx = true} : vector<4x256xf32> -> vector<4x256xf32>
    %530 = arith.mulf %511, %529 : vector<4x256xf32>
    %531 = arith.addf %489, %530 : vector<4x256xf32>
    %c0_159 = arith.constant 0 : index
    %c0_160 = arith.constant 0 : index
    %c0_161 = arith.constant 0 : index
    %532 = vector.load %arg10[%c0_159, %c0_160, %c0_161] : memref<1x4x256xf32, #tpu.memory_space<vmem>>, vector<1x4x256xf32>
    %533 = vector.shape_cast %532 : vector<1x4x256xf32> to vector<4x256xf32>
    %534 = vector.shape_cast %531 : vector<4x256xf32> to vector<1x4x256xf32>
    tpu.vector_store %arg10[%c0_159, %c0_160, %c0_161], %534 {strides = array<i32>} : memref<1x4x256xf32, #tpu.memory_space<vmem>>, vector<1x4x256xf32>,
    return
  }
  func.func @transform_0(%arg0: i32) -> (i32, i32, i32) {
    %c0_i32 = arith.constant 0 : i32
    %c0_i32_0 = arith.constant 0 : i32
    %c0_i32_1 = arith.constant 0 : i32
    return %arg0, %c0_i32, %c0_i32_0 : i32, i32, i32
  }
  func.func @transform_1(%arg0: i32) -> (i32, i32) {
    %c0_i32 = arith.constant 0 : i32
    %c0_i32_0 = arith.constant 0 : i32
    %c0_i32_1 = arith.constant 0 : i32
    return %c0_i32, %c0_i32_0 : i32, i32
  }
  func.func @transform_2(%arg0: i32) -> (i32, i32) {
    %c0_i32 = arith.constant 0 : i32
    %c0_i32_0 = arith.constant 0 : i32
    %c0_i32_1 = arith.constant 0 : i32
    return %c0_i32, %c0_i32_0 : i32, i32
  }
  func.func @transform_3(%arg0: i32) -> (i32, i32) {
    %c0_i32 = arith.constant 0 : i32
    %c0_i32_0 = arith.constant 0 : i32
    %c0_i32_1 = arith.constant 0 : i32
    return %c0_i32, %c0_i32_0 : i32, i32
  }
  func.func @transform_4(%arg0: i32) -> (i32, i32) {
    %c0_i32 = arith.constant 0 : i32
    %c0_i32_0 = arith.constant 0 : i32
    %c0_i32_1 = arith.constant 0 : i32
    return %c0_i32, %c0_i32_0 : i32, i32
  }
  func.func @transform_5(%arg0: i32) -> i32 {
    %c0_i32 = arith.constant 0 : i32
    %c0_i32_0 = arith.constant 0 : i32
    return %c0_i32 : i32
  }
  func.func @transform_6(%arg0: i32) -> i32 {
    %c0_i32 = arith.constant 0 : i32
    %c0_i32_0 = arith.constant 0 : i32
    return %c0_i32 : i32
  }
  func.func @transform_7(%arg0: i32) -> i32 {
    %c0_i32 = arith.constant 0 : i32
    %c0_i32_0 = arith.constant 0 : i32
    return %c0_i32 : i32
  }
  func.func @transform_8(%arg0: i32) -> i32 {
    %c0_i32 = arith.constant 0 : i32
    %c0_i32_0 = arith.constant 0 : i32
    return %c0_i32 : i32
  }
  func.func @transform_9(%arg0: i32) -> (i32, i32, i32) {
    %c0_i32 = arith.constant 0 : i32
    %c0_i32_0 = arith.constant 0 : i32
    %c0_i32_1 = arith.constant 0 : i32
    return %arg0, %c0_i32, %c0_i32_0 : i32, i32, i32
  }
}

</mosaic_0001>

<llo_original>
// kernel: rational_basic_block_forward.1
$region0: #{rational_basic_block_forward.1}
  #allocation0 [shape = 'u32[]', space=smem, size = 0x4, offset = 0x4, fixed_abs, tag = 'smem constant byte address 0x4 - core index']
  #allocation1 [shape = 'u32[144,128]{1,0:T(1,128)}', space=vmem, size = 0x12000, scoped, tag = 'internal scratch']
  #allocation2 [shape = 'f32[36,256]{1,0:T(8,128)}', space=vmem, size = 0xa000, scoped, tag = 'scratch operand']
  %s0 = inlined_call_operand.vmem [shape: f32[2,4,256], index: 0, kind: input, shape index: {}]
  %s1 = inlined_call_operand.vmem [shape: bf16[4,36], index: 1, kind: input, shape index: {}]
  %s2 = inlined_call_operand.vmem [shape: f32[4,1], index: 2, kind: input, shape index: {}]
  %s3 = inlined_call_operand.vmem [shape: bf16[4,36], index: 3, kind: input, shape index: {}]
  %s4 = inlined_call_operand.vmem [shape: f32[4,1], index: 4, kind: input, shape index: {}]
  %s5 = inlined_call_operand.vmem [shape: f32[30], index: 5, kind: input, shape index: {}]
  %s6 = inlined_call_operand.vmem [shape: f32[20], index: 6, kind: input, shape index: {}]
  %s7 = inlined_call_operand.vmem [shape: f32[30], index: 7, kind: input, shape index: {}]
  %s8 = inlined_call_operand.vmem [shape: f32[20], index: 8, kind: input, shape index: {}]
  %s9 = inlined_call_operand.vmem [shape: f32[2,4,256], index: 9, kind: output, shape index: {}]
  %s10 = sld [smem:[#allocation0]]
  $region85: #{rational_basic_block_forward.1} parent=0
    _
  %s12 = ssub.s32 1, %s10
  %s13 = scalar_select 0, %s12, %s10
  $region1: #{rational_basic_block_forward.1} parent=0
    #allocation3 [shape = 'u8[512]{0}', space=smem, size = 0x200, scoped, tag = 'input window, operand 5, single buffered']
    #allocation4 [shape = 's32[2]{0}', space=sflag, size = 0x8, scoped, tag = 'scoped memory for rational_basic_block_forward.1']
    #allocation5 [shape = 'u8[512]{0}', space=smem, size = 0x200, scoped, tag = 'input window, operand 6, single buffered']
    #allocation6 [shape = 's32[1]{0}', space=sflag, size = 0x4, scoped, tag = 'scoped memory for rational_basic_block_forward.1']
    #allocation7 [shape = 'u8[512]{0}', space=smem, size = 0x200, scoped, tag = 'input window, operand 7, single buffered']
    #allocation8 [shape = 'u8[512]{0}', space=smem, size = 0x200, scoped, tag = 'input window, operand 8, single buffered']
    #allocation9 [shape = 's32[1]{0}', space=sflag, size = 0x4, scoped, tag = 'scoped memory for rational_basic_block_forward.1']
    %14 = vsyncpa [#allocation4], 0
    %15 = vsyncpa [#allocation6], 0
    %16 = vsyncpa [#allocation9], 0
    loop: start=0, step=1, limit=4
    $region2: #{rational_basic_block_forward.1} parent=1 // loop_pre_header
      _
    $region3: #{rational_basic_block_forward.1} parent=1 // loop_header
      %s18 = sphi 0, %s22
      %p19 = scmp.ge.s32.totalorder %s18, 4
      %s28 = sphi 0, %s30
      %s31 = sphi 0, %s28
      %s32 = sphi 0, %s31
      %s48 = sphi 0, %s32
      %s52 = sphi 0, %s52
      %s54 = sphi 0, %s52
      %s55 = sphi 0, %s54
      %s69 = sphi 0, %s55
      %s73 = sphi 0, %s73
      %s75 = sphi 0, %s73
      %s76 = sphi 0, %s75
      %s90 = sphi 0, %s76
      %s94 = sphi 0, %s94
      %s96 = sphi 0, %s94
      %s97 = sphi 0, %s96
      %s111 = sphi 0, %s97
      %s115 = sphi 0, %s115
      %s117 = sphi 0, %s115
      %s118 = sphi 0, %s117
      %s132 = sphi 0, %s118
      %s136 = sphi 0, %s136
      %s138 = sphi 0, %s136
      %s139 = sphi 0, %s138
      %s153 = sphi 0, %s139
      %s157 = sphi 0, %s157
      %s159 = sphi 0, %s157
      %s160 = sphi 0, %s159
      %s174 = sphi 0, %s160
      %s178 = sphi 0, %s178
      %s180 = sphi 0, %s178
      %s181 = sphi 0, %s180
      %s195 = sphi 0, %s181
      %s199 = sphi 0, %s199
      %s201 = sphi 0, %s199
      %s202 = sphi 0, %s201
      %s216 = sphi 0, %s202
      %s222 = sphi 0, %s224
      %s225 = sphi 0, %s222
      %s226 = sphi 0, %s225
      %s242 = sphi 0, %s226
    $region4: #{rational_basic_block_forward.1} parent=1 // loop_header_branch
      %21 = sbr.rel (%p19) target = $region8
    $region5: #{rational_basic_block_forward.1} parent=1 // loop_body
      %s23 = ssub.s32 %s18, 1
      %s24 = ssub.s32 %s18, 2
      %s25 = sadd.s32 %s18, 1
      %s26 = ssub.s32 %s18, %s25
      %p27 = scmp.eq.s32.totalorder %s26, 0
      %s29 = sadd.s32 %s28, 1
      %s30 = scalar_select %p27, %s28, %s29
      %p33 = pneg %p27
      %p34 = scmp.eq.s32.totalorder %s18, 1
      %p35 = por %p33, %p34
      %p36 = scmp.ne.s32.totalorder %s28, %s31
      %p37 = scmp.eq.s32.totalorder %s18, 0
      %p38 = por %p36, %p37
      %p39 = scmp.ne.s32.totalorder %s28, %s31
      %p40 = scmp.eq.s32.totalorder %s23, 1
      %p41 = por %p39, %p40
      %p42 = scmp.ne.s32.totalorder %s31, %s32
      %p43 = scmp.eq.s32.totalorder %s23, 0
      %p44 = por %p42, %p43
      %p45 = scmp.ne.s32.totalorder %s31, %s32
      %p46 = scmp.eq.s32.totalorder %s24, 1
      %p47 = por %p45, %p46
      %p49 = scmp.ne.s32.totalorder %s32, %s48
      %p50 = scmp.eq.s32.totalorder %s24, 0
      %p51 = por %p49, %p50
      %s53 = sadd.s32 %s52, 1
      %p56 = scmp.eq.s32.totalorder %s18, 1
      %p57 = scmp.ne.s32.totalorder %s52, %s54
      %p58 = scmp.eq.s32.totalorder %s18, 0
      %p59 = por %p57, %p58
      %p60 = scmp.ne.s32.totalorder %s52, %s54
      %p61 = scmp.eq.s32.totalorder %s23, 1
      %p62 = por %p60, %p61
      %p63 = scmp.ne.s32.totalorder %s54, %s55
      %p64 = scmp.eq.s32.totalorder %s23, 0
      %p65 = por %p63, %p64
      %p66 = scmp.ne.s32.totalorder %s54, %s55
      %p67 = scmp.eq.s32.totalorder %s24, 1
      %p68 = por %p66, %p67
      %p70 = scmp.ne.s32.totalorder %s55, %s69
      %p71 = scmp.eq.s32.totalorder %s24, 0
      %p72 = por %p70, %p71
      %s74 = sadd.s32 %s73, 1
      %p77 = scmp.eq.s32.totalorder %s18, 1
      %p78 = scmp.ne.s32.totalorder %s73, %s75
      %p79 = scmp.eq.s32.totalorder %s18, 0
      %p80 = por %p78, %p79
      %p81 = scmp.ne.s32.totalorder %s73, %s75
      %p82 = scmp.eq.s32.totalorder %s23, 1
      %p83 = por %p81, %p82
      %p84 = scmp.ne.s32.totalorder %s75, %s76
      %p85 = scmp.eq.s32.totalorder %s23, 0
      %p86 = por %p84, %p85
      %p87 = scmp.ne.s32.totalorder %s75, %s76
      %p88 = scmp.eq.s32.totalorder %s24, 1
      %p89 = por %p87, %p88
      %p91 = scmp.ne.s32.totalorder %s76, %s90
      %p92 = scmp.eq.s32.totalorder %s24, 0
      %p93 = por %p91, %p92
      %s95 = sadd.s32 %s94, 1
      %p98 = scmp.eq.s32.totalorder %s18, 1
      %p99 = scmp.ne.s32.totalorder %s94, %s96
      %p100 = scmp.eq.s32.totalorder %s18, 0
      %p101 = por %p99, %p100
      %p102 = scmp.ne.s32.totalorder %s94, %s96
      %p103 = scmp.eq.s32.totalorder %s23, 1
      %p104 = por %p102, %p103
      %p105 = scmp.ne.s32.totalorder %s96, %s97
      %p106 = scmp.eq.s32.totalorder %s23, 0
      %p107 = por %p105, %p106
      %p108 = scmp.ne.s32.totalorder %s96, %s97
      %p109 = scmp.eq.s32.totalorder %s24, 1
      %p110 = por %p108, %p109
      %p112 = scmp.ne.s32.totalorder %s97, %s111
      %p113 = scmp.eq.s32.totalorder %s24, 0
      %p114 = por %p112, %p113
      %s116 = sadd.s32 %s115, 1
      %p119 = scmp.eq.s32.totalorder %s18, 1
      %p120 = scmp.ne.s32.totalorder %s115, %s117
      %p121 = scmp.eq.s32.totalorder %s18, 0
      %p122 = por %p120, %p121
      %p123 = scmp.ne.s32.totalorder %s115, %s117
      %p124 = scmp.eq.s32.totalorder %s23, 1
      %p125 = por %p123, %p124
      %p126 = scmp.ne.s32.totalorder %s117, %s118
      %p127 = scmp.eq.s32.totalorder %s23, 0
      %p128 = por %p126, %p127
      %p129 = scmp.ne.s32.totalorder %s117, %s118
      %p130 = scmp.eq.s32.totalorder %s24, 1
      %p131 = por %p129, %p130
      %p133 = scmp.ne.s32.totalorder %s118, %s132
      %p134 = scmp.eq.s32.totalorder %s24, 0
      %p135 = por %p133, %p134
      %s137 = sadd.s32 %s136, 1
      %p140 = scmp.eq.s32.totalorder %s18, 1
      %p141 = scmp.ne.s32.totalorder %s136, %s138
      %p142 = scmp.eq.s32.totalorder %s18, 0
      %p143 = por %p141, %p142
      %p144 = scmp.ne.s32.totalorder %s136, %s138
      %p145 = scmp.eq.s32.totalorder %s23, 1
      %p146 = por %p144, %p145
      %p147 = scmp.ne.s32.totalorder %s138, %s139
      %p148 = scmp.eq.s32.totalorder %s23, 0
      %p149 = por %p147, %p148
      %p150 = scmp.ne.s32.totalorder %s138, %s139
      %p151 = scmp.eq.s32.totalorder %s24, 1
      %p152 = por %p150, %p151
      %p154 = scmp.ne.s32.totalorder %s139, %s153
      %p155 = scmp.eq.s32.totalorder %s24, 0
      %p156 = por %p154, %p155
      %s158 = sadd.s32 %s157, 1
      %p161 = scmp.eq.s32.totalorder %s18, 1
      %p162 = scmp.ne.s32.totalorder %s157, %s159
      %p163 = scmp.eq.s32.totalorder %s18, 0
      %p164 = por %p162, %p163
      %p165 = scmp.ne.s32.totalorder %s157, %s159
      %p166 = scmp.eq.s32.totalorder %s23, 1
      %p167 = por %p165, %p166
      %p168 = scmp.ne.s32.totalorder %s159, %s160
      %p169 = scmp.eq.s32.totalorder %s23, 0
      %p170 = por %p168, %p169
      %p171 = scmp.ne.s32.totalorder %s159, %s160
      %p172 = scmp.eq.s32.totalorder %s24, 1
      %p173 = por %p171, %p172
      %p175 = scmp.ne.s32.totalorder %s160, %s174
      %p176 = scmp.eq.s32.totalorder %s24, 0
      %p177 = por %p175, %p176
      %s179 = sadd.s32 %s178, 1
      %p182 = scmp.eq.s32.totalorder %s18, 1
      %p183 = scmp.ne.s32.totalorder %s178, %s180
      %p184 = scmp.eq.s32.totalorder %s18, 0
      %p185 = por %p183, %p184
      %p186 = scmp.ne.s32.totalorder %s178, %s180
      %p187 = scmp.eq.s32.totalorder %s23, 1
      %p188 = por %p186, %p187
      %p189 = scmp.ne.s32.totalorder %s180, %s181
      %p190 = scmp.eq.s32.totalorder %s23, 0
      %p191 = por %p189, %p190
      %p192 = scmp.ne.s32.totalorder %s180, %s181
      %p193 = scmp.eq.s32.totalorder %s24, 1
      %p194 = por %p192, %p193
      %p196 = scmp.ne.s32.totalorder %s181, %s195
      %p197 = scmp.eq.s32.totalorder %s24, 0
      %p198 = por %p196, %p197
      %s200 = sadd.s32 %s199, 1
      %p203 = scmp.eq.s32.totalorder %s18, 1
      %p204 = scmp.ne.s32.totalorder %s199, %s201
      %p205 = scmp.eq.s32.totalorder %s18, 0
      %p206 = por %p204, %p205
      %p207 = scmp.ne.s32.totalorder %s199, %s201
      %p208 = scmp.eq.s32.totalorder %s23, 1
      %p209 = por %p207, %p208
      %p210 = scmp.ne.s32.totalorder %s201, %s202
      %p211 = scmp.eq.s32.totalorder %s23, 0
      %p212 = por %p210, %p211
      %p213 = scmp.ne.s32.totalorder %s201, %s202
      %p214 = scmp.eq.s32.totalorder %s24, 1
      %p215 = por %p213, %p214
      %p217 = scmp.ne.s32.totalorder %s202, %s216
      %p218 = scmp.eq.s32.totalorder %s24, 0
      %p219 = por %p217, %p218
      %s220 = ssub.s32 %s18, %s25
      %p221 = scmp.eq.s32.totalorder %s220, 0
      %s223 = sadd.s32 %s222, 1
      %s224 = scalar_select %p221, %s222, %s223
      %p227 = pneg %p221
      %p228 = scmp.eq.s32.totalorder %s18, 1
      %p229 = por %p227, %p228
      %p230 = scmp.ne.s32.totalorder %s222, %s225
      %p231 = scmp.eq.s32.totalorder %s18, 0
      %p232 = por %p230, %p231
      %p233 = scmp.ne.s32.totalorder %s222, %s225
      %p234 = scmp.eq.s32.totalorder %s23, 1
      %p235 = por %p233, %p234
      %p236 = scmp.ne.s32.totalorder %s225, %s226
      %p237 = scmp.eq.s32.totalorder %s23, 0
      %p238 = por %p236, %p237
      %p239 = scmp.ne.s32.totalorder %s225, %s226
      %p240 = scmp.eq.s32.totalorder %s24, 1
      %p241 = por %p239, %p240
      %p243 = scmp.ne.s32.totalorder %s226, %s242
      %p244 = scmp.eq.s32.totalorder %s24, 0
      %p245 = por %p243, %p244
      %p246 = scmp.le.s32.totalorder 1, %s18
      %p247 = scmp.lt.s32.totalorder %s18, 3
      %p248 = pnand %p246, %p247
      %p249 = pneg %p248
      // Predicated region
      $region9: #{rational_basic_block_forward.1} parent=5 // pred_check
        _
      $region10: #{rational_basic_block_forward.1} parent=5 // pred_check_branch
        %251 = sbr.rel (%p248) target = $region12
      $region11: #{rational_basic_block_forward.1} parent=5 // pred_region
        %s252 = ssub.s32 %s18, 1
        // Predicated region
        $region13: #{rational_basic_block_forward.1} parent=11 // pred_check
          %p253 = pneg %p65
        $region14: #{rational_basic_block_forward.1} parent=11 // pred_check_branch
          %255 = sbr.rel (%p253) target = $region16
        $region15: #{rational_basic_block_forward.1} parent=11 // pred_region
          _
        $region16: #{rational_basic_block_forward.1} parent=11 // pred_fallthru
          _
        // Predicated region
        $region17: #{rational_basic_block_forward.1} parent=11 // pred_check
          %p256 = pneg %p86
        $region18: #{rational_basic_block_forward.1} parent=11 // pred_check_branch
          %258 = sbr.rel (%p256) target = $region20
        $region19: #{rational_basic_block_forward.1} parent=11 // pred_region
          _
        $region20: #{rational_basic_block_forward.1} parent=11 // pred_fallthru
          _
        // Predicated region
        $region21: #{rational_basic_block_forward.1} parent=11 // pred_check
          %p259 = pneg %p107
        $region22: #{rational_basic_block_forward.1} parent=11 // pred_check_branch
          %261 = sbr.rel (%p259) target = $region24
        $region23: #{rational_basic_block_forward.1} parent=11 // pred_region
          _
        $region24: #{rational_basic_block_forward.1} parent=11 // pred_fallthru
          _
        // Predicated region
        $region25: #{rational_basic_block_forward.1} parent=11 // pred_check
          %p262 = pneg %p128
        $region26: #{rational_basic_block_forward.1} parent=11 // pred_check_branch
          %264 = sbr.rel (%p262) target = $region28
        $region27: #{rational_basic_block_forward.1} parent=11 // pred_region
          _
        $region28: #{rational_basic_block_forward.1} parent=11 // pred_fallthru
          _
        // Predicated region
        $region29: #{rational_basic_block_forward.1} parent=11 // pred_check
          %p265 = pneg %p149
        $region30: #{rational_basic_block_forward.1} parent=11 // pred_check_branch
          %267 = sbr.rel (%p265) target = $region32
        $region31: #{rational_basic_block_forward.1} parent=11 // pred_region
          %s269 = ssub.s32 16, 16
          %270 = vsyncadd [#allocation4], %s269
          %s272 = sshll.u32 %s5, 4
          %s273 = int_to_ptr.vmem [resolvable:$true] %s272
          %275 = dma.vmem_to_smem %s273, 16, [#allocation3], [#allocation4]
        $region32: #{rational_basic_block_forward.1} parent=11 // pred_fallthru
          _
        // Predicated region
        $region33: #{rational_basic_block_forward.1} parent=11 // pred_check
          %p276 = pneg %p170
        $region34: #{rational_basic_block_forward.1} parent=11 // pred_check_branch
          %278 = sbr.rel (%p276) target = $region36
        $region35: #{rational_basic_block_forward.1} parent=11 // pred_region
          %s280 = ssub.s32 16, 16
          %281 = vsyncadd [#allocation6], %s280
          %s283 = sshll.u32 %s6, 4
          %s284 = int_to_ptr.vmem [resolvable:$true] %s283
          %286 = dma.vmem_to_smem %s284, 16, [#allocation5], [#allocation6]
        $region36: #{rational_basic_block_forward.1} parent=11 // pred_fallthru
          _
        // Predicated region
        $region37: #{rational_basic_block_forward.1} parent=11 // pred_check
          %p287 = pneg %p191
        $region38: #{rational_basic_block_forward.1} parent=11 // pred_check_branch
          %289 = sbr.rel (%p287) target = $region40
        $region39: #{rational_basic_block_forward.1} parent=11 // pred_region
          %s291 = ssub.s32 16, 16
          %292 = vsyncadd [#allocation6], %s291
          %s294 = sshll.u32 %s7, 4
          %s295 = int_to_ptr.vmem [resolvable:$true] %s294
          %297 = dma.vmem_to_smem %s295, 16, [#allocation7], [#allocation6]
        $region40: #{rational_basic_block_forward.1} parent=11 // pred_fallthru
          _
        // Predicated region
        $region41: #{rational_basic_block_forward.1} parent=11 // pred_check
          %p298 = pneg %p212
        $region42: #{rational_basic_block_forward.1} parent=11 // pred_check_branch
          %300 = sbr.rel (%p298) target = $region44
        $region43: #{rational_basic_block_forward.1} parent=11 // pred_region
          %s302 = ssub.s32 16, 16
          %303 = vsyncadd [#allocation9], %s302
          %s305 = sshll.u32 %s8, 4
          %s306 = int_to_ptr.vmem [resolvable:$true] %s305
          %308 = dma.vmem_to_smem %s306, 16, [#allocation8], [#allocation9]
        $region44: #{rational_basic_block_forward.1} parent=11 // pred_fallthru
          _
      $region12: #{rational_basic_block_forward.1} parent=5 // pred_fallthru
        _
      %p309 = scmp.lt.s32.totalorder %s18, 2
      // Predicated region
      $region45: #{rational_basic_block_forward.1} parent=5 // pred_check
        %p310 = pneg %p309
      $region46: #{rational_basic_block_forward.1} parent=5 // pred_check_branch
        %312 = sbr.rel (%p310) target = $region48
      $region47: #{rational_basic_block_forward.1} parent=5 // pred_region
        // Predicated region
        $region49: #{rational_basic_block_forward.1} parent=47 // pred_check
          %p313 = pneg %p38
        $region50: #{rational_basic_block_forward.1} parent=47 // pred_check_branch
          %315 = sbr.rel (%p313) target = $region52
        $region51: #{rational_basic_block_forward.1} parent=47 // pred_region
          %p316 = scmp.lt.s32.totalorder %s18, 1
          %s317 = scalar_select %p316, %s18, 1
          %s318 = smul.addr %s317, 2
          %s319 = smul.addr %s318, 4
          %s320 = scalar_lea.vmem %s0, %s319
        $region52: #{rational_basic_block_forward.1} parent=47 // pred_fallthru
          _
      $region48: #{rational_basic_block_forward.1} parent=5 // pred_fallthru
        _
      %p321 = scmp.le.s32.totalorder 1, %s18
      %p322 = scmp.lt.s32.totalorder %s18, 3
      %p323 = pnand %p321, %p322
      %p324 = pneg %p323
      // Predicated region
      $region53: #{rational_basic_block_forward.1} parent=5 // pred_check
        _
      $region54: #{rational_basic_block_forward.1} parent=5 // pred_check_branch
        %326 = sbr.rel (%p323) target = $region56
      $region55: #{rational_basic_block_forward.1} parent=5 // pred_region
        %s327 = ssub.s32 %s18, 1
        // Predicated region
        $region57: #{rational_basic_block_forward.1} parent=55 // pred_check
          %p328 = pneg %p149
        $region58: #{rational_basic_block_forward.1} parent=55 // pred_check_branch
          %330 = sbr.rel (%p328) target = $region60
        $region59: #{rational_basic_block_forward.1} parent=55 // pred_region
          %331 = dma.done [#allocation4], 16
        $region60: #{rational_basic_block_forward.1} parent=55 // pred_fallthru
          _
        // Predicated region
        $region61: #{rational_basic_block_forward.1} parent=55 // pred_check
          %p332 = pneg %p170
        $region62: #{rational_basic_block_forward.1} parent=55 // pred_check_branch
          %334 = sbr.rel (%p332) target = $region64
        $region63: #{rational_basic_block_forward.1} parent=55 // pred_region
          %335 = dma.done [#allocation6], 16
        $region64: #{rational_basic_block_forward.1} parent=55 // pred_fallthru
          _
        // Predicated region
        $region65: #{rational_basic_block_forward.1} parent=55 // pred_check
          %p336 = pneg %p191
        $region66: #{rational_basic_block_forward.1} parent=55 // pred_check_branch
          %338 = sbr.rel (%p336) target = $region68
        $region67: #{rational_basic_block_forward.1} parent=55 // pred_region
          %339 = dma.done [#allocation6], 16
        $region68: #{rational_basic_block_forward.1} parent=55 // pred_fallthru
          _
        // Predicated region
        $region69: #{rational_basic_block_forward.1} parent=55 // pred_check
          %p340 = pneg %p212
        $region70: #{rational_basic_block_forward.1} parent=55 // pred_check_branch
          %342 = sbr.rel (%p340) target = $region72
        $region71: #{rational_basic_block_forward.1} parent=55 // pred_region
          %343 = dma.done [#allocation9], 16
        $region72: #{rational_basic_block_forward.1} parent=55 // pred_fallthru
          _
        %344 = sfence
        %p345 = scmp.lt.s32.totalorder %s23, 1
        %s346 = scalar_select %p345, %s23, 1
        %s347 = smul.addr %s346, 2
        %s348 = smul.addr %s347, 4
        %s349 = scalar_lea.vmem %s0, %s348
        %p350 = pneg %p44
        %p351 = pneg %p41
        %p352 = pneg %p65
        %p353 = pneg %p62
        %p354 = pneg %p86
        %p355 = pneg %p83
        %p356 = pneg %p107
        %p357 = pneg %p104
        %p358 = pneg %p128
        %p359 = pneg %p125
        %p360 = pneg %p149
        %p361 = pneg %p146
        %p362 = pneg %p170
        %p363 = pneg %p167
        %p364 = pneg %p191
        %p365 = pneg %p188
        %p366 = pneg %p212
        %p367 = pneg %p209
        %p368 = pneg %p238
        %p369 = pneg %p235
        %p370 = scmp.lt.s32.totalorder %s23, 1
        %s371 = scalar_select %p370, %s23, 1
        %s372 = smul.addr %s371, 2
        %s373 = smul.addr %s372, 4
        %s374 = scalar_lea.vmem %s9, %s373
        %p375 = scmp.lt.s32.totalorder %s23, 1
        %s376 = scalar_select %p375, %s23, 1
        %s377 = smul.addr %s376, 2
        %s378 = smul.addr %s377, 4
        %s379 = scalar_lea.vmem %s0, %s378
        %p380 = scmp.lt.s32.totalorder %s23, 1
        %s381 = scalar_select %p380, %s23, 1
        %s382 = smul.addr %s381, 2
        %s383 = smul.addr %s382, 4
        %s384 = scalar_lea.vmem %s9, %s383
        %v386 = vld [vmem:[%s379] sm:$0xff]
        %v387 = vlaneseq
        %v388 = vand.u32 %v387, 127
        %v389 = vadd.s32 %v388, 128
        %v390 = vand.u32 %v388, 15
        %v391 = vand.u32 %v389, 15
        %vm392 = vcmp.ge.s32.totalorder %v388, 16
        %vm393 = vcmp.ge.s32.totalorder %v389, 16
        %vm394 = vcmp.lt.s32.totalorder %v388, 240
        %vm395 = vcmp.lt.s32.totalorder %v389, 240
        %vm396 = vcmp.ge.s32.totalorder %v390, 1
        %vm397 = vcmp.ge.s32.totalorder %v391, 1
        %vm398 = vcmp.le.s32.totalorder %v390, 14
        %vm399 = vcmp.le.s32.totalorder %v391, 14
        %v401 = vcombine.high %v386, %v386
        %403 = vrot.lane.b32.xlu0 %v386, 17
        %v404 = vpop.permute.xlu0 %403
        %405 = vrot.lane.b32.xlu0 %v401, 17
        %v406 = vpop.permute.xlu0 %405
        %vm407 = vcmp.lt.s32.totalorder %v388, 17
        %v408 = vsel %vm407, %v404, %v406
        %v409 = vsel %vm407, %v406, %v404
        %vm410 = vmand %vm392, %vm396
        %vm411 = vmand %vm393, %vm397
        %v412 = vsel %vm410, %v409, 0.0
        %v413 = vsel %vm411, %v408, 0.0
        %414 = vst [vmem:[#allocation2] sm:$0xf] %v412
        %415 = vst [vmem:[#allocation2 + $0x8] sm:$0xf] %v413
        %416 = vrot.lane.b32.xlu0 %v386, 16
        %v417 = vpop.permute.xlu0 %416
        %418 = vrot.lane.b32.xlu0 %v401, 16
        %v419 = vpop.permute.xlu0 %418
        %vm420 = vcmp.lt.s32.totalorder %v388, 16
        %v421 = vsel %vm420, %v417, %v419
        %v422 = vsel %vm420, %v419, %v417
        %v423 = vsel %vm392, %v422, 0.0
        %v424 = vsel %vm393, %v421, 0.0
        %v427 = vrot.slane %v423, 4
        %v428 = vrot.slane %v424, 4
        %431 = vst [vmem:[#allocation2] sm:$0xf0] %v427
        %432 = vst [vmem:[#allocation2 + $0x8] sm:$0xf0] %v428
        %433 = vrot.lane.b32.xlu0 %v386, 15
        %v434 = vpop.permute.xlu0 %433
        %435 = vrot.lane.b32.xlu0 %v401, 15
        %v436 = vpop.permute.xlu0 %435
        %vm437 = vcmp.lt.s32.totalorder %v388, 15
        %v438 = vsel %vm437, %v434, %v436
        %v439 = vsel %vm437, %v436, %v434
        %vm440 = vmand %vm392, %vm398
        %vm441 = vmand %vm393, %vm399
        %v442 = vsel %vm440, %v439, 0.0
        %v443 = vsel %vm441, %v438, 0.0
        %444 = vst [vmem:[#allocation2 + $0x10] sm:$0xf] %v442
        %445 = vst [vmem:[#allocation2 + $0x18] sm:$0xf] %v443
        %446 = vrot.lane.b32.xlu0 %v386, 1
        %v447 = vpop.permute.xlu0 %446
        %448 = vrot.lane.b32.xlu0 %v401, 1
        %v449 = vpop.permute.xlu0 %448
        %vm450 = vcmp.lt.s32.totalorder %v388, 1
        %v451 = vsel %vm450, %v447, %v449
        %v452 = vsel %vm450, %v449, %v447
        %v453 = vsel %vm396, %v452, 0.0
        %v454 = vsel %vm397, %v451, 0.0
        %v457 = vrot.slane %v453, 4
        %v458 = vrot.slane %v454, 4
        %461 = vst [vmem:[#allocation2 + $0x10] sm:$0xf0] %v457
        %462 = vst [vmem:[#allocation2 + $0x18] sm:$0xf0] %v458
        %463 = vst [vmem:[#allocation2 + $0x20] sm:$0xf] %v386
        %464 = vst [vmem:[#allocation2 + $0x28] sm:$0xf] %v401
        %465 = vrot.lane.b32.xlu0 %v386, 127
        %v466 = vpop.permute.xlu0 %465
        %467 = vrot.lane.b32.xlu0 %v401, 127
        %v468 = vpop.permute.xlu0 %467
        %vm469 = vcmp.lt.s32.totalorder %v388, 127
        %v470 = vsel %vm469, %v466, %v468
        %v471 = vsel %vm469, %v468, %v466
        %v472 = vsel %vm398, %v470, 0.0
        %v473 = vsel %vm399, %v471, 0.0
        %v476 = vrot.slane %v472, 4
        %v477 = vrot.slane %v473, 4
        %480 = vst [vmem:[#allocation2 + $0x20] sm:$0xf0] %v476
        %481 = vst [vmem:[#allocation2 + $0x28] sm:$0xf0] %v477
        %482 = vrot.lane.b32.xlu0 %v386, 113
        %v483 = vpop.permute.xlu0 %482
        %484 = vrot.lane.b32.xlu0 %v401, 113
        %v485 = vpop.permute.xlu0 %484
        %vm486 = vcmp.lt.s32.totalorder %v388, 113
        %v487 = vsel %vm486, %v483, %v485
        %v488 = vsel %vm486, %v485, %v483
        %vm489 = vmand %vm394, %vm396
        %vm490 = vmand %vm395, %vm397
        %v491 = vsel %vm489, %v487, 0.0
        %v492 = vsel %vm490, %v488, 0.0
        %493 = vst [vmem:[#allocation2 + $0x30] sm:$0xf] %v491
        %494 = vst [vmem:[#allocation2 + $0x38] sm:$0xf] %v492
        %495 = vrot.lane.b32.xlu0 %v386, 112
        %v496 = vpop.permute.xlu0 %495
        %497 = vrot.lane.b32.xlu0 %v401, 112
        %v498 = vpop.permute.xlu0 %497
        %vm499 = vcmp.lt.s32.totalorder %v388, 112
        %v500 = vsel %vm499, %v496, %v498
        %v501 = vsel %vm499, %v498, %v496
        %v502 = vsel %vm394, %v500, 0.0
        %v503 = vsel %vm395, %v501, 0.0
        %v506 = vrot.slane %v502, 4
        %v507 = vrot.slane %v503, 4
        %510 = vst [vmem:[#allocation2 + $0x30] sm:$0xf0] %v506
        %511 = vst [vmem:[#allocation2 + $0x38] sm:$0xf0] %v507
        %512 = vrot.lane.b32.xlu0 %v386, 111
        %v513 = vpop.permute.xlu0 %512
        %514 = vrot.lane.b32.xlu0 %v401, 111
        %v515 = vpop.permute.xlu0 %514
        %vm516 = vcmp.lt.s32.totalorder %v388, 111
        %v517 = vsel %vm516, %v513, %v515
        %v518 = vsel %vm516, %v515, %v513
        %vm519 = vmand %vm394, %vm398
        %vm520 = vmand %vm395, %vm399
        %v521 = vsel %vm519, %v517, 0.0
        %v522 = vsel %vm520, %v518, 0.0
        %523 = vst [vmem:[#allocation2 + $0x40] sm:$0xf] %v521
        %524 = vst [vmem:[#allocation2 + $0x48] sm:$0xf] %v522
        %v525 = vld [vmem:[%s1] sm:$0x3]
        %v526 = vld [vmem:[#allocation2] sm:$0xff]
        %v527 = vld [vmem:[#allocation2 + $0x8] sm:$0xff]
        %v528 = vld [vmem:[#allocation2 + $0x10] sm:$0xff]
        %v529 = vld [vmem:[#allocation2 + $0x18] sm:$0xff]
        %v530 = vld [vmem:[#allocation2 + $0x20] sm:$0xff]
        %v531 = vld [vmem:[#allocation2 + $0x28] sm:$0xff]
        %v532 = vld [vmem:[#allocation2 + $0x30] sm:$0xff]
        %v533 = vld [vmem:[#allocation2 + $0x38] sm:$0xff]
        %v534 = vld [vmem:[#allocation2 + $0x40] sm:$0xf]
        %v535 = vld [vmem:[#allocation2 + $0x48] sm:$0xf]
        %v536 = vpack.c.bf16 %v528, %v526
        %v537 = vpack.c.bf16 %v529, %v527
        %v538 = vpack.c.bf16 %v532, %v530
        %v539 = vpack.c.bf16 %v533, %v531
        %v540 = vpack.c.bf16 %v534, %v534
        %v541 = vpack.c.bf16 %v535, %v535
        %v542 = vld [vmem:[%s2] sm:$0xf]
        %544 = vset.pattern.permute.xlu0 0
        %545 = vperm.xlu0 %544, %v542
        %v546 = vpop.permute.xlu0 %545
        %vm548 = vcmask 293888
        %v550 = vsel %vm548, %v525, 0
        %vm552 = vcmask 1041408
        %v554 = vsel %vm552, %v540, 0
        %v557 = vsel %vm552, %v541, 0
        %559 = vmatprep.subr.bf16.mxu0 0
        %560 = vmatpush1.bf16.msra.mxu0 0
        %561 = vmatprep.subr.bf16.mxu0 0
        %562 = vmatpush1.bf16.msra.mxu0 0
        %563 = vmatprep.subr.bf16.mxu0 0
        %564 = vmatpush1.bf16.msra.mxu0 0
        %565 = vmatprep.subr.bf16.mxu0 0
        %566 = vmatpush1.bf16.msra.mxu0 0
        %567 = vmatprep.subr.bf16.mxu0 0
        %568 = vmatpush1.bf16.msra.mxu0 0
        %569 = vmatprep.subr.bf16.mxu0 %v557
        %570 = vmatpush1.bf16.msra.mxu0 %v554
        %571 = vmatprep.subr.bf16.mxu0 %v539
        %572 = vmatpush1.bf16.msra.mxu0 %v538
        %573 = vmatprep.subr.bf16.mxu0 %v537
        %574 = vmatpush1.bf16.msra.mxu0 %v536
        %575 = vmatprep.subr.bf16.mxu0 0
        %576 = vmatpush2.bf16.msra.mxu0 0
        %577 = vmatprep.subr.bf16.mxu0 0
        %578 = vmatpush2.bf16.msra.mxu0 0
        %579 = vmatprep.subr.bf16.mxu0 0
        %580 = vmatpush2.bf16.msra.mxu0 0
        %581 = vmatprep.subr.bf16.mxu0 0
        %582 = vmatpush2.bf16.msra.mxu0 0
        %583 = vmatprep.subr.bf16.mxu0 0
        %584 = vmatpush2.bf16.msra.mxu0 0
        %585 = vmatprep.subr.bf16.mxu0 0
        %586 = vmatpush2.bf16.msra.mxu0 0
        %587 = vmatprep.subr.bf16.mxu0 0
        %588 = vmatpush2.bf16.msra.mxu0 0
        %589 = vmatprep.subr.bf16.mxu0 0
        %590 = vmatpush2.bf16.msra.mxu0 0
        %591 = vmatprep.mubr.bf16.mxu0 0
        %592 = vmatmul.mubr.bf16.gmra.mxu0 %v550
        %v593 = vpop.f32.mrf.mxu0
        %v594 = vadd.f32 %v546, %v593
        %v595 = vpop.f32.mrf.mxu0
        %v596 = vadd.f32 %v546, %v595
        %v597 = vpop.f32.mrf.mxu0
        %v598 = vpop.f32.mrf.mxu0
        %599 = vdwg.mxu0
        %v600 = vmul.f32 %v594, %v594
        %v601 = vmul.f32 %v596, %v596
        %v602 = vmul.f32 %v600, %v594
        %v603 = vmul.f32 %v601, %v596
        %v604 = vmul.f32 %v600, %v600
        %v605 = vmul.f32 %v601, %v601
        %v606 = vmul.f32 %v604, %v594
        %v607 = vmul.f32 %v605, %v596
        %v608 = vand.u32 2147483647, %v594
        %v609 = vand.u32 2147483647, %v596
        %v610 = vmul.f32 %v608, %v600
        %v611 = vmul.f32 %v609, %v601
        %s612 = sld [smem:[#allocation3]]
        %s613 = sld [smem:[#allocation3 + $0x1]]
        %v614 = vstv %s613
        %v615 = vmul.f32 %v614, %v594
        %v616 = vmul.f32 %v614, %v596
        %v617 = vstv %s612
        %v618 = vadd.f32 %v617, %v615
        %v619 = vadd.f32 %v617, %v616
        %s620 = sld [smem:[#allocation3 + $0x2]]
        %v621 = vstv %s620
        %v622 = vmul.f32 %v621, %v600
        %v623 = vmul.f32 %v621, %v601
        %v624 = vadd.f32 %v618, %v622
        %v625 = vadd.f32 %v619, %v623
        %s626 = sld [smem:[#allocation3 + $0x3]]
        %v627 = vstv %s626
        %v628 = vmul.f32 %v627, %v602
        %v629 = vmul.f32 %v627, %v603
        %v630 = vadd.f32 %v624, %v628
        %v631 = vadd.f32 %v625, %v629
        %s632 = sld [smem:[#allocation3 + $0x4]]
        %v633 = vstv %s632
        %v634 = vmul.f32 %v633, %v604
        %v635 = vmul.f32 %v633, %v605
        %v636 = vadd.f32 %v630, %v634
        %v637 = vadd.f32 %v631, %v635
        %s638 = sld [smem:[#allocation3 + $0x5]]
        %v639 = vstv %s638
        %v640 = vmul.f32 %v639, %v606
        %v641 = vmul.f32 %v639, %v607
        %v642 = vadd.f32 %v636, %v640
        %v643 = vadd.f32 %v637, %v641
        %s644 = sld [smem:[#allocation5]]
        %v645 = vstv %s644
        %v646 = vmul.f32 %v645, %v608
        %v647 = vmul.f32 %v645, %v609
        %v648 = vadd.f32 %v646, 1.0
        %v649 = vadd.f32 %v647, 1.0
        %s650 = sld [smem:[#allocation5 + $0x1]]
        %v651 = vstv %s650
        %v652 = vmul.f32 %v651, %v600
        %v653 = vmul.f32 %v651, %v601
        %v654 = vadd.f32 %v648, %v652
        %v655 = vadd.f32 %v649, %v653
        %s656 = sld [smem:[#allocation5 + $0x2]]
        %v657 = vstv %s656
        %v658 = vmul.f32 %v657, %v610
        %v659 = vmul.f32 %v657, %v611
        %v660 = vadd.f32 %v654, %v658
        %v661 = vadd.f32 %v655, %v659
        %s662 = sld [smem:[#allocation5 + $0x3]]
        %v663 = vstv %s662
        %v664 = vmul.f32 %v663, %v604
        %v665 = vmul.f32 %v663, %v605
        %v666 = vadd.f32 %v660, %v664
        %v667 = vadd.f32 %v661, %v665
        %v668 = vrcp.pop %v666
        %v669 = vrcp.pop %v667
        %v670 = vmul.f32 %v642, %v668
        %v671 = vmul.f32 %v643, %v669
        %s672 = sld [smem:[#allocation3 + $0x6]]
        %s673 = sld [smem:[#allocation3 + $0x7]]
        %v674 = vstv %s673
        %v675 = vmul.f32 %v674, %v594
        %v676 = vmul.f32 %v674, %v596
        %v677 = vstv %s672
        %v678 = vadd.f32 %v677, %v675
        %v679 = vadd.f32 %v677, %v676
        %s680 = sld [smem:[#allocation3 + $0x8]]
        %v681 = vstv %s680
        %v682 = vmul.f32 %v681, %v600
        %v683 = vmul.f32 %v681, %v601
        %v684 = vadd.f32 %v678, %v682
        %v685 = vadd.f32 %v679, %v683
        %s686 = sld [smem:[#allocation3 + $0x9]]
        %v687 = vstv %s686
        %v688 = vmul.f32 %v687, %v602
        %v689 = vmul.f32 %v687, %v603
        %v690 = vadd.f32 %v684, %v688
        %v691 = vadd.f32 %v685, %v689
        %s692 = sld [smem:[#allocation3 + $0xa]]
        %v693 = vstv %s692
        %v694 = vmul.f32 %v693, %v604
        %v695 = vmul.f32 %v693, %v605
        %v696 = vadd.f32 %v690, %v694
        %v697 = vadd.f32 %v691, %v695
        %s698 = sld [smem:[#allocation3 + $0xb]]
        %v699 = vstv %s698
        %v700 = vmul.f32 %v699, %v606
        %v701 = vmul.f32 %v699, %v607
        %v702 = vadd.f32 %v696, %v700
        %v703 = vadd.f32 %v697, %v701
        %s704 = sld [smem:[#allocation5 + $0x4]]
        %v705 = vstv %s704
        %v706 = vmul.f32 %v705, %v608
        %v707 = vmul.f32 %v705, %v609
        %v708 = vadd.f32 %v706, 1.0
        %v709 = vadd.f32 %v707, 1.0
        %s710 = sld [smem:[#allocation5 + $0x5]]
        %v711 = vstv %s710
        %v712 = vmul.f32 %v711, %v600
        %v713 = vmul.f32 %v711, %v601
        %v714 = vadd.f32 %v708, %v712
        %v715 = vadd.f32 %v709, %v713
        %s716 = sld [smem:[#allocation5 + $0x6]]
        %v717 = vstv %s716
        %v718 = vmul.f32 %v717, %v610
        %v719 = vmul.f32 %v717, %v611
        %v720 = vadd.f32 %v714, %v718
        %v721 = vadd.f32 %v715, %v719
        %s722 = sld [smem:[#allocation5 + $0x7]]
        %v723 = vstv %s722
        %v724 = vmul.f32 %v723, %v604
        %v725 = vmul.f32 %v723, %v605
        %v726 = vadd.f32 %v720, %v724
        %v727 = vadd.f32 %v721, %v725
        %v728 = vrcp.pop %v726
        %v729 = vrcp.pop %v727
        %v730 = vmul.f32 %v702, %v728
        %v731 = vmul.f32 %v703, %v729
        %v732 = vadd.f32 %v670, %v730
        %v733 = vadd.f32 %v671, %v731
        %s734 = sld [smem:[#allocation3 + $0xc]]
        %s735 = sld [smem:[#allocation3 + $0xd]]
        %v736 = vstv %s735
        %v737 = vmul.f32 %v736, %v594
        %v738 = vmul.f32 %v736, %v596
        %v739 = vstv %s734
        %v740 = vadd.f32 %v739, %v737
        %v741 = vadd.f32 %v739, %v738
        %s742 = sld [smem:[#allocation3 + $0xe]]
        %v743 = vstv %s742
        %v744 = vmul.f32 %v743, %v600
        %v745 = vmul.f32 %v743, %v601
        %v746 = vadd.f32 %v740, %v744
        %v747 = vadd.f32 %v741, %v745
        %s748 = sld [smem:[#allocation3 + $0xf]]
        %v749 = vstv %s748
        %v750 = vmul.f32 %v749, %v602
        %v751 = vmul.f32 %v749, %v603
        %v752 = vadd.f32 %v746, %v750
        %v753 = vadd.f32 %v747, %v751
        %s754 = sld [smem:[#allocation3 + $0x10]]
        %v755 = vstv %s754
        %v756 = vmul.f32 %v755, %v604
        %v757 = vmul.f32 %v755, %v605
        %v758 = vadd.f32 %v752, %v756
        %v759 = vadd.f32 %v753, %v757
        %s760 = sld [smem:[#allocation3 + $0x11]]
        %v761 = vstv %s760
        %v762 = vmul.f32 %v761, %v606
        %v763 = vmul.f32 %v761, %v607
        %v764 = vadd.f32 %v758, %v762
        %v765 = vadd.f32 %v759, %v763
        %s766 = sld [smem:[#allocation5 + $0x8]]
        %v767 = vstv %s766
        %v768 = vmul.f32 %v767, %v608
        %v769 = vmul.f32 %v767, %v609
        %v770 = vadd.f32 %v768, 1.0
        %v771 = vadd.f32 %v769, 1.0
        %s772 = sld [smem:[#allocation5 + $0x9]]
        %v773 = vstv %s772
        %v774 = vmul.f32 %v773, %v600
        %v775 = vmul.f32 %v773, %v601
        %v776 = vadd.f32 %v770, %v774
        %v777 = vadd.f32 %v771, %v775
        %s778 = sld [smem:[#allocation5 + $0xa]]
        %v779 = vstv %s778
        %v780 = vmul.f32 %v779, %v610
        %v781 = vmul.f32 %v779, %v611
        %v782 = vadd.f32 %v776, %v780
        %v783 = vadd.f32 %v777, %v781
        %s784 = sld [smem:[#allocation5 + $0xb]]
        %v785 = vstv %s784
        %v786 = vmul.f32 %v785, %v604
        %v787 = vmul.f32 %v785, %v605
        %v788 = vadd.f32 %v782, %v786
        %v789 = vadd.f32 %v783, %v787
        %v790 = vrcp.pop %v788
        %v791 = vrcp.pop %v789
        %v792 = vmul.f32 %v764, %v790
        %v793 = vmul.f32 %v765, %v791
        %v794 = vadd.f32 %v732, %v792
        %v795 = vadd.f32 %v733, %v793
        %s796 = sld [smem:[#allocation3 + $0x12]]
        %s797 = sld [smem:[#allocation3 + $0x13]]
        %v798 = vstv %s797
        %v799 = vmul.f32 %v798, %v594
        %v800 = vmul.f32 %v798, %v596
        %v801 = vstv %s796
        %v802 = vadd.f32 %v801, %v799
        %v803 = vadd.f32 %v801, %v800
        %s804 = sld [smem:[#allocation3 + $0x14]]
        %v805 = vstv %s804
        %v806 = vmul.f32 %v805, %v600
        %v807 = vmul.f32 %v805, %v601
        %v808 = vadd.f32 %v802, %v806
        %v809 = vadd.f32 %v803, %v807
        %s810 = sld [smem:[#allocation3 + $0x15]]
        %v811 = vstv %s810
        %v812 = vmul.f32 %v811, %v602
        %v813 = vmul.f32 %v811, %v603
        %v814 = vadd.f32 %v808, %v812
        %v815 = vadd.f32 %v809, %v813
        %s816 = sld [smem:[#allocation3 + $0x16]]
        %v817 = vstv %s816
        %v818 = vmul.f32 %v817, %v604
        %v819 = vmul.f32 %v817, %v605
        %v820 = vadd.f32 %v814, %v818
        %v821 = vadd.f32 %v815, %v819
        %s822 = sld [smem:[#allocation3 + $0x17]]
        %v823 = vstv %s822
        %v824 = vmul.f32 %v823, %v606
        %v825 = vmul.f32 %v823, %v607
        %v826 = vadd.f32 %v820, %v824
        %v827 = vadd.f32 %v821, %v825
        %s828 = sld [smem:[#allocation5 + $0xc]]
        %v829 = vstv %s828
        %v830 = vmul.f32 %v829, %v608
        %v831 = vmul.f32 %v829, %v609
        %v832 = vadd.f32 %v830, 1.0
        %v833 = vadd.f32 %v831, 1.0
        %s834 = sld [smem:[#allocation5 + $0xd]]
        %v835 = vstv %s834
        %v836 = vmul.f32 %v835, %v600
        %v837 = vmul.f32 %v835, %v601
        %v838 = vadd.f32 %v832, %v836
        %v839 = vadd.f32 %v833, %v837
        %s840 = sld [smem:[#allocation5 + $0xe]]
        %v841 = vstv %s840
        %v842 = vmul.f32 %v841, %v610
        %v843 = vmul.f32 %v841, %v611
        %v844 = vadd.f32 %v838, %v842
        %v845 = vadd.f32 %v839, %v843
        %s846 = sld [smem:[#allocation5 + $0xf]]
        %v847 = vstv %s846
        %v848 = vmul.f32 %v847, %v604
        %v849 = vmul.f32 %v847, %v605
        %v850 = vadd.f32 %v844, %v848
        %v851 = vadd.f32 %v845, %v849
        %v852 = vrcp.pop %v850
        %v853 = vrcp.pop %v851
        %v854 = vmul.f32 %v826, %v852
        %v855 = vmul.f32 %v827, %v853
        %v856 = vadd.f32 %v794, %v854
        %v857 = vadd.f32 %v795, %v855
        %s858 = sld [smem:[#allocation3 + $0x18]]
        %s859 = sld [smem:[#allocation3 + $0x19]]
        %v860 = vstv %s859
        %v861 = vmul.f32 %v860, %v594
        %v862 = vmul.f32 %v860, %v596
        %v863 = vstv %s858
        %v864 = vadd.f32 %v863, %v861
        %v865 = vadd.f32 %v863, %v862
        %s866 = sld [smem:[#allocation3 + $0x1a]]
        %v867 = vstv %s866
        %v868 = vmul.f32 %v867, %v600
        %v869 = vmul.f32 %v867, %v601
        %v870 = vadd.f32 %v864, %v868
        %v871 = vadd.f32 %v865, %v869
        %s872 = sld [smem:[#allocation3 + $0x1b]]
        %v873 = vstv %s872
        %v874 = vmul.f32 %v873, %v602
        %v875 = vmul.f32 %v873, %v603
        %v876 = vadd.f32 %v870, %v874
        %v877 = vadd.f32 %v871, %v875
        %s878 = sld [smem:[#allocation3 + $0x1c]]
        %v879 = vstv %s878
        %v880 = vmul.f32 %v879, %v604
        %v881 = vmul.f32 %v879, %v605
        %v882 = vadd.f32 %v876, %v880
        %v883 = vadd.f32 %v877, %v881
        %s884 = sld [smem:[#allocation3 + $0x1d]]
        %v885 = vstv %s884
        %v886 = vmul.f32 %v885, %v606
        %v887 = vmul.f32 %v885, %v607
        %v888 = vadd.f32 %v882, %v886
        %v889 = vadd.f32 %v883, %v887
        %s890 = sld [smem:[#allocation5 + $0x10]]
        %v891 = vstv %s890
        %v892 = vmul.f32 %v891, %v608
        %v893 = vmul.f32 %v891, %v609
        %v894 = vadd.f32 %v892, 1.0
        %v895 = vadd.f32 %v893, 1.0
        %s896 = sld [smem:[#allocation5 + $0x11]]
        %v897 = vstv %s896
        %v898 = vmul.f32 %v897, %v600
        %v899 = vmul.f32 %v897, %v601
        %v900 = vadd.f32 %v894, %v898
        %v901 = vadd.f32 %v895, %v899
        %s902 = sld [smem:[#allocation5 + $0x12]]
        %v903 = vstv %s902
        %v904 = vmul.f32 %v903, %v610
        %v905 = vmul.f32 %v903, %v611
        %v906 = vadd.f32 %v900, %v904
        %v907 = vadd.f32 %v901, %v905
        %s908 = sld [smem:[#allocation5 + $0x13]]
        %v909 = vstv %s908
        %v910 = vmul.f32 %v909, %v604
        %v911 = vmul.f32 %v909, %v605
        %v912 = vadd.f32 %v906, %v910
        %v913 = vadd.f32 %v907, %v911
        %v914 = vrcp.pop %v912
        %v915 = vrcp.pop %v913
        %v916 = vmul.f32 %v888, %v914
        %v917 = vmul.f32 %v889, %v915
        %v918 = vadd.f32 %v856, %v916
        %v919 = vadd.f32 %v857, %v917
        %920 = vrot.lane.b32.xlu0 %v918, 17
        %v921 = vpop.permute.xlu0 %920
        %922 = vrot.lane.b32.xlu0 %v919, 17
        %v923 = vpop.permute.xlu0 %922
        %v924 = vsel %vm407, %v921, %v923
        %v925 = vsel %vm407, %v923, %v921
        %v926 = vsel %vm410, %v925, 0.0
        %v927 = vsel %vm411, %v924, 0.0
        %928 = vst [vmem:[#allocation2] sm:$0xf] %v926
        %929 = vst [vmem:[#allocation2 + $0x8] sm:$0xf] %v927
        %930 = vrot.lane.b32.xlu0 %v918, 16
        %v931 = vpop.permute.xlu0 %930
        %932 = vrot.lane.b32.xlu0 %v919, 16
        %v933 = vpop.permute.xlu0 %932
        %v934 = vsel %vm420, %v931, %v933
        %v935 = vsel %vm420, %v933, %v931
        %v936 = vsel %vm392, %v935, 0.0
        %v937 = vsel %vm393, %v934, 0.0
        %v940 = vrot.slane %v936, 4
        %v941 = vrot.slane %v937, 4
        %944 = vst [vmem:[#allocation2] sm:$0xf0] %v940
        %945 = vst [vmem:[#allocation2 + $0x8] sm:$0xf0] %v941
        %946 = vrot.lane.b32.xlu0 %v918, 15
        %v947 = vpop.permute.xlu0 %946
        %948 = vrot.lane.b32.xlu0 %v919, 15
        %v949 = vpop.permute.xlu0 %948
        %v950 = vsel %vm437, %v947, %v949
        %v951 = vsel %vm437, %v949, %v947
        %v952 = vsel %vm440, %v951, 0.0
        %v953 = vsel %vm441, %v950, 0.0
        %954 = vst [vmem:[#allocation2 + $0x10] sm:$0xf] %v952
        %955 = vst [vmem:[#allocation2 + $0x18] sm:$0xf] %v953
        %956 = vrot.lane.b32.xlu0 %v918, 1
        %v957 = vpop.permute.xlu0 %956
        %958 = vrot.lane.b32.xlu0 %v919, 1
        %v959 = vpop.permute.xlu0 %958
        %v960 = vsel %vm450, %v957, %v959
        %v961 = vsel %vm450, %v959, %v957
        %v962 = vsel %vm396, %v961, 0.0
        %v963 = vsel %vm397, %v960, 0.0
        %v966 = vrot.slane %v962, 4
        %v967 = vrot.slane %v963, 4
        %970 = vst [vmem:[#allocation2 + $0x10] sm:$0xf0] %v966
        %971 = vst [vmem:[#allocation2 + $0x18] sm:$0xf0] %v967
        %972 = vst [vmem:[#allocation2 + $0x20] sm:$0xf] %v918
        %973 = vst [vmem:[#allocation2 + $0x28] sm:$0xf] %v919
        %974 = vrot.lane.b32.xlu0 %v918, 127
        %v975 = vpop.permute.xlu0 %974
        %976 = vrot.lane.b32.xlu0 %v919, 127
        %v977 = vpop.permute.xlu0 %976
        %v978 = vsel %vm469, %v975, %v977
        %v979 = vsel %vm469, %v977, %v975
        %v980 = vsel %vm398, %v978, 0.0
        %v981 = vsel %vm399, %v979, 0.0
        %v984 = vrot.slane %v980, 4
        %v985 = vrot.slane %v981, 4
        %988 = vst [vmem:[#allocation2 + $0x20] sm:$0xf0] %v984
        %989 = vst [vmem:[#allocation2 + $0x28] sm:$0xf0] %v985
        %990 = vrot.lane.b32.xlu0 %v918, 113
        %v991 = vpop.permute.xlu0 %990
        %992 = vrot.lane.b32.xlu0 %v919, 113
        %v993 = vpop.permute.xlu0 %992
        %v994 = vsel %vm486, %v991, %v993
        %v995 = vsel %vm486, %v993, %v991
        %v996 = vsel %vm489, %v994, 0.0
        %v997 = vsel %vm490, %v995, 0.0
        %998 = vst [vmem:[#allocation2 + $0x30] sm:$0xf] %v996
        %999 = vst [vmem:[#allocation2 + $0x38] sm:$0xf] %v997
        %1000 = vrot.lane.b32.xlu0 %v918, 112
        %v1001 = vpop.permute.xlu0 %1000
        %1002 = vrot.lane.b32.xlu0 %v919, 112
        %v1003 = vpop.permute.xlu0 %1002
        %v1004 = vsel %vm499, %v1001, %v1003
        %v1005 = vsel %vm499, %v1003, %v1001
        %v1006 = vsel %vm394, %v1004, 0.0
        %v1007 = vsel %vm395, %v1005, 0.0
        %v1010 = vrot.slane %v1006, 4
        %v1011 = vrot.slane %v1007, 4
        %1014 = vst [vmem:[#allocation2 + $0x30] sm:$0xf0] %v1010
        %1015 = vst [vmem:[#allocation2 + $0x38] sm:$0xf0] %v1011
        %1016 = vrot.lane.b32.xlu0 %v918, 111
        %v1017 = vpop.permute.xlu0 %1016
        %1018 = vrot.lane.b32.xlu0 %v919, 111
        %v1019 = vpop.permute.xlu0 %1018
        %v1020 = vsel %vm516, %v1017, %v1019
        %v1021 = vsel %vm516, %v1019, %v1017
        %v1022 = vsel %vm519, %v1020, 0.0
        %v1023 = vsel %vm520, %v1021, 0.0
        %1024 = vst [vmem:[#allocation2 + $0x40] sm:$0xf] %v1022
        %1025 = vst [vmem:[#allocation2 + $0x48] sm:$0xf] %v1023
        %v1026 = vld [vmem:[%s3] sm:$0x3]
        %v1027 = vld [vmem:[#allocation2] sm:$0xff]
        %v1028 = vld [vmem:[#allocation2 + $0x8] sm:$0xff]
        %v1029 = vld [vmem:[#allocation2 + $0x10] sm:$0xff]
        %v1030 = vld [vmem:[#allocation2 + $0x18] sm:$0xff]
        %v1031 = vld [vmem:[#allocation2 + $0x20] sm:$0xff]
        %v1032 = vld [vmem:[#allocation2 + $0x28] sm:$0xff]
        %v1033 = vld [vmem:[#allocation2 + $0x30] sm:$0xff]
        %v1034 = vld [vmem:[#allocation2 + $0x38] sm:$0xff]
        %v1035 = vld [vmem:[#allocation2 + $0x40] sm:$0xf]
        %v1036 = vld [vmem:[#allocation2 + $0x48] sm:$0xf]
        %v1037 = vpack.c.bf16 %v1029, %v1027
        %v1038 = vpack.c.bf16 %v1030, %v1028
        %v1039 = vpack.c.bf16 %v1033, %v1031
        %v1040 = vpack.c.bf16 %v1034, %v1032
        %v1041 = vpack.c.bf16 %v1035, %v1035
        %v1042 = vpack.c.bf16 %v1036, %v1036
        %v1043 = vld [vmem:[%s4] sm:$0xf]
        %1045 = vset.pattern.permute.xlu0 0
        %1046 = vperm.xlu0 %1045, %v1043
        %v1047 = vpop.permute.xlu0 %1046
        %v1050 = vsel %vm548, %v1026, 0
        %v1053 = vsel %vm552, %v1041, 0
        %v1056 = vsel %vm552, %v1042, 0
        %1058 = vmatprep.subr.bf16.mxu0 0
        %1059 = vmatpush1.bf16.msra.mxu0 0
        %1060 = vmatprep.subr.bf16.mxu0 0
        %1061 = vmatpush1.bf16.msra.mxu0 0
        %1062 = vmatprep.subr.bf16.mxu0 0
        %1063 = vmatpush1.bf16.msra.mxu0 0
        %1064 = vmatprep.subr.bf16.mxu0 0
        %1065 = vmatpush1.bf16.msra.mxu0 0
        %1066 = vmatprep.subr.bf16.mxu0 0
        %1067 = vmatpush1.bf16.msra.mxu0 0
        %1068 = vmatprep.subr.bf16.mxu0 %v1056
        %1069 = vmatpush1.bf16.msra.mxu0 %v1053
        %1070 = vmatprep.subr.bf16.mxu0 %v1040
        %1071 = vmatpush1.bf16.msra.mxu0 %v1039
        %1072 = vmatprep.subr.bf16.mxu0 %v1038
        %1073 = vmatpush1.bf16.msra.mxu0 %v1037
        %1074 = vmatprep.subr.bf16.mxu0 0
        %1075 = vmatpush2.bf16.msra.mxu0 0
        %1076 = vmatprep.subr.bf16.mxu0 0
        %1077 = vmatpush2.bf16.msra.mxu0 0
        %1078 = vmatprep.subr.bf16.mxu0 0
        %1079 = vmatpush2.bf16.msra.mxu0 0
        %1080 = vmatprep.subr.bf16.mxu0 0
        %1081 = vmatpush2.bf16.msra.mxu0 0
        %1082 = vmatprep.subr.bf16.mxu0 0
        %1083 = vmatpush2.bf16.msra.mxu0 0
        %1084 = vmatprep.subr.bf16.mxu0 0
        %1085 = vmatpush2.bf16.msra.mxu0 0
        %1086 = vmatprep.subr.bf16.mxu0 0
        %1087 = vmatpush2.bf16.msra.mxu0 0
        %1088 = vmatprep.subr.bf16.mxu0 0
        %1089 = vmatpush2.bf16.msra.mxu0 0
        %1090 = vmatprep.mubr.bf16.mxu0 0
        %1091 = vmatmul.mubr.bf16.gmra.mxu0 %v1050
        %v1092 = vpop.f32.mrf.mxu0
        %v1093 = vadd.f32 %v1047, %v1092
        %v1094 = vpop.f32.mrf.mxu0
        %v1095 = vadd.f32 %v1047, %v1094
        %v1096 = vpop.f32.mrf.mxu0
        %v1097 = vpop.f32.mrf.mxu0
        %1098 = vdwg.mxu0
        %v1099 = vadd.f32 %v1093, %v386
        %v1100 = vadd.f32 %v1095, %v401
        %v1101 = vmul.f32 %v1099, %v1099
        %v1102 = vmul.f32 %v1100, %v1100
        %v1103 = vmul.f32 %v1101, %v1099
        %v1104 = vmul.f32 %v1102, %v1100
        %v1105 = vmul.f32 %v1101, %v1101
        %v1106 = vmul.f32 %v1102, %v1102
        %v1107 = vmul.f32 %v1105, %v1099
        %v1108 = vmul.f32 %v1106, %v1100
        %v1109 = vand.u32 2147483647, %v1099
        %v1110 = vand.u32 2147483647, %v1100
        %v1111 = vmul.f32 %v1109, %v1101
        %v1112 = vmul.f32 %v1110, %v1102
        %s1113 = sld [smem:[#allocation7]]
        %s1114 = sld [smem:[#allocation7 + $0x1]]
        %v1115 = vstv %s1114
        %v1116 = vmul.f32 %v1115, %v1099
        %v1117 = vmul.f32 %v1115, %v1100
        %v1118 = vstv %s1113
        %v1119 = vadd.f32 %v1118, %v1116
        %v1120 = vadd.f32 %v1118, %v1117
        %s1121 = sld [smem:[#allocation7 + $0x2]]
        %v1122 = vstv %s1121
        %v1123 = vmul.f32 %v1122, %v1101
        %v1124 = vmul.f32 %v1122, %v1102
        %v1125 = vadd.f32 %v1119, %v1123
        %v1126 = vadd.f32 %v1120, %v1124
        %s1127 = sld [smem:[#allocation7 + $0x3]]
        %v1128 = vstv %s1127
        %v1129 = vmul.f32 %v1128, %v1103
        %v1130 = vmul.f32 %v1128, %v1104
        %v1131 = vadd.f32 %v1125, %v1129
        %v1132 = vadd.f32 %v1126, %v1130
        %s1133 = sld [smem:[#allocation7 + $0x4]]
        %v1134 = vstv %s1133
        %v1135 = vmul.f32 %v1134, %v1105
        %v1136 = vmul.f32 %v1134, %v1106
        %v1137 = vadd.f32 %v1131, %v1135
        %v1138 = vadd.f32 %v1132, %v1136
        %s1139 = sld [smem:[#allocation7 + $0x5]]
        %v1140 = vstv %s1139
        %v1141 = vmul.f32 %v1140, %v1107
        %v1142 = vmul.f32 %v1140, %v1108
        %v1143 = vadd.f32 %v1137, %v1141
        %v1144 = vadd.f32 %v1138, %v1142
        %s1145 = sld [smem:[#allocation8]]
        %v1146 = vstv %s1145
        %v1147 = vmul.f32 %v1146, %v1109
        %v1148 = vmul.f32 %v1146, %v1110
        %v1149 = vadd.f32 %v1147, 1.0
        %v1150 = vadd.f32 %v1148, 1.0
        %s1151 = sld [smem:[#allocation8 + $0x1]]
        %v1152 = vstv %s1151
        %v1153 = vmul.f32 %v1152, %v1101
        %v1154 = vmul.f32 %v1152, %v1102
        %v1155 = vadd.f32 %v1149, %v1153
        %v1156 = vadd.f32 %v1150, %v1154
        %s1157 = sld [smem:[#allocation8 + $0x2]]
        %v1158 = vstv %s1157
        %v1159 = vmul.f32 %v1158, %v1111
        %v1160 = vmul.f32 %v1158, %v1112
        %v1161 = vadd.f32 %v1155, %v1159
        %v1162 = vadd.f32 %v1156, %v1160
        %s1163 = sld [smem:[#allocation8 + $0x3]]
        %v1164 = vstv %s1163
        %v1165 = vmul.f32 %v1164, %v1105
        %v1166 = vmul.f32 %v1164, %v1106
        %v1167 = vadd.f32 %v1161, %v1165
        %v1168 = vadd.f32 %v1162, %v1166
        %v1169 = vrcp.pop %v1167
        %v1170 = vrcp.pop %v1168
        %v1171 = vmul.f32 %v1143, %v1169
        %v1172 = vmul.f32 %v1144, %v1170
        %s1173 = sld [smem:[#allocation7 + $0x6]]
        %s1174 = sld [smem:[#allocation7 + $0x7]]
        %v1175 = vstv %s1174
        %v1176 = vmul.f32 %v1175, %v1099
        %v1177 = vmul.f32 %v1175, %v1100
        %v1178 = vstv %s1173
        %v1179 = vadd.f32 %v1178, %v1176
        %v1180 = vadd.f32 %v1178, %v1177
        %s1181 = sld [smem:[#allocation7 + $0x8]]
        %v1182 = vstv %s1181
        %v1183 = vmul.f32 %v1182, %v1101
        %v1184 = vmul.f32 %v1182, %v1102
        %v1185 = vadd.f32 %v1179, %v1183
        %v1186 = vadd.f32 %v1180, %v1184
        %s1187 = sld [smem:[#allocation7 + $0x9]]
        %v1188 = vstv %s1187
        %v1189 = vmul.f32 %v1188, %v1103
        %v1190 = vmul.f32 %v1188, %v1104
        %v1191 = vadd.f32 %v1185, %v1189
        %v1192 = vadd.f32 %v1186, %v1190
        %s1193 = sld [smem:[#allocation7 + $0xa]]
        %v1194 = vstv %s1193
        %v1195 = vmul.f32 %v1194, %v1105
        %v1196 = vmul.f32 %v1194, %v1106
        %v1197 = vadd.f32 %v1191, %v1195
        %v1198 = vadd.f32 %v1192, %v1196
        %s1199 = sld [smem:[#allocation7 + $0xb]]
        %v1200 = vstv %s1199
        %v1201 = vmul.f32 %v1200, %v1107
        %v1202 = vmul.f32 %v1200, %v1108
        %v1203 = vadd.f32 %v1197, %v1201
        %v1204 = vadd.f32 %v1198, %v1202
        %s1205 = sld [smem:[#allocation8 + $0x4]]
        %v1206 = vstv %s1205
        %v1207 = vmul.f32 %v1206, %v1109
        %v1208 = vmul.f32 %v1206, %v1110
        %v1209 = vadd.f32 %v1207, 1.0
        %v1210 = vadd.f32 %v1208, 1.0
        %s1211 = sld [smem:[#allocation8 + $0x5]]
        %v1212 = vstv %s1211
        %v1213 = vmul.f32 %v1212, %v1101
        %v1214 = vmul.f32 %v1212, %v1102
        %v1215 = vadd.f32 %v1209, %v1213
        %v1216 = vadd.f32 %v1210, %v1214
        %s1217 = sld [smem:[#allocation8 + $0x6]]
        %v1218 = vstv %s1217
        %v1219 = vmul.f32 %v1218, %v1111
        %v1220 = vmul.f32 %v1218, %v1112
        %v1221 = vadd.f32 %v1215, %v1219
        %v1222 = vadd.f32 %v1216, %v1220
        %s1223 = sld [smem:[#allocation8 + $0x7]]
        %v1224 = vstv %s1223
        %v1225 = vmul.f32 %v1224, %v1105
        %v1226 = vmul.f32 %v1224, %v1106
        %v1227 = vadd.f32 %v1221, %v1225
        %v1228 = vadd.f32 %v1222, %v1226
        %v1229 = vrcp.pop %v1227
        %v1230 = vrcp.pop %v1228
        %v1231 = vmul.f32 %v1203, %v1229
        %v1232 = vmul.f32 %v1204, %v1230
        %v1233 = vadd.f32 %v1171, %v1231
        %v1234 = vadd.f32 %v1172, %v1232
        %s1235 = sld [smem:[#allocation7 + $0xc]]
        %s1236 = sld [smem:[#allocation7 + $0xd]]
        %v1237 = vstv %s1236
        %v1238 = vmul.f32 %v1237, %v1099
        %v1239 = vmul.f32 %v1237, %v1100
        %v1240 = vstv %s1235
        %v1241 = vadd.f32 %v1240, %v1238
        %v1242 = vadd.f32 %v1240, %v1239
        %s1243 = sld [smem:[#allocation7 + $0xe]]
        %v1244 = vstv %s1243
        %v1245 = vmul.f32 %v1244, %v1101
        %v1246 = vmul.f32 %v1244, %v1102
        %v1247 = vadd.f32 %v1241, %v1245
        %v1248 = vadd.f32 %v1242, %v1246
        %s1249 = sld [smem:[#allocation7 + $0xf]]
        %v1250 = vstv %s1249
        %v1251 = vmul.f32 %v1250, %v1103
        %v1252 = vmul.f32 %v1250, %v1104
        %v1253 = vadd.f32 %v1247, %v1251
        %v1254 = vadd.f32 %v1248, %v1252
        %s1255 = sld [smem:[#allocation7 + $0x10]]
        %v1256 = vstv %s1255
        %v1257 = vmul.f32 %v1256, %v1105
        %v1258 = vmul.f32 %v1256, %v1106
        %v1259 = vadd.f32 %v1253, %v1257
        %v1260 = vadd.f32 %v1254, %v1258
        %s1261 = sld [smem:[#allocation7 + $0x11]]
        %v1262 = vstv %s1261
        %v1263 = vmul.f32 %v1262, %v1107
        %v1264 = vmul.f32 %v1262, %v1108
        %v1265 = vadd.f32 %v1259, %v1263
        %v1266 = vadd.f32 %v1260, %v1264
        %s1267 = sld [smem:[#allocation8 + $0x8]]
        %v1268 = vstv %s1267
        %v1269 = vmul.f32 %v1268, %v1109
        %v1270 = vmul.f32 %v1268, %v1110
        %v1271 = vadd.f32 %v1269, 1.0
        %v1272 = vadd.f32 %v1270, 1.0
        %s1273 = sld [smem:[#allocation8 + $0x9]]
        %v1274 = vstv %s1273
        %v1275 = vmul.f32 %v1274, %v1101
        %v1276 = vmul.f32 %v1274, %v1102
        %v1277 = vadd.f32 %v1271, %v1275
        %v1278 = vadd.f32 %v1272, %v1276
        %s1279 = sld [smem:[#allocation8 + $0xa]]
        %v1280 = vstv %s1279
        %v1281 = vmul.f32 %v1280, %v1111
        %v1282 = vmul.f32 %v1280, %v1112
        %v1283 = vadd.f32 %v1277, %v1281
        %v1284 = vadd.f32 %v1278, %v1282
        %s1285 = sld [smem:[#allocation8 + $0xb]]
        %v1286 = vstv %s1285
        %v1287 = vmul.f32 %v1286, %v1105
        %v1288 = vmul.f32 %v1286, %v1106
        %v1289 = vadd.f32 %v1283, %v1287
        %v1290 = vadd.f32 %v1284, %v1288
        %v1291 = vrcp.pop %v1289
        %v1292 = vrcp.pop %v1290
        %v1293 = vmul.f32 %v1265, %v1291
        %v1294 = vmul.f32 %v1266, %v1292
        %v1295 = vadd.f32 %v1233, %v1293
        %v1296 = vadd.f32 %v1234, %v1294
        %s1297 = sld [smem:[#allocation7 + $0x12]]
        %s1298 = sld [smem:[#allocation7 + $0x13]]
        %v1299 = vstv %s1298
        %v1300 = vmul.f32 %v1299, %v1099
        %v1301 = vmul.f32 %v1299, %v1100
        %v1302 = vstv %s1297
        %v1303 = vadd.f32 %v1302, %v1300
        %v1304 = vadd.f32 %v1302, %v1301
        %s1305 = sld [smem:[#allocation7 + $0x14]]
        %v1306 = vstv %s1305
        %v1307 = vmul.f32 %v1306, %v1101
        %v1308 = vmul.f32 %v1306, %v1102
        %v1309 = vadd.f32 %v1303, %v1307
        %v1310 = vadd.f32 %v1304, %v1308
        %s1311 = sld [smem:[#allocation7 + $0x15]]
        %v1312 = vstv %s1311
        %v1313 = vmul.f32 %v1312, %v1103
        %v1314 = vmul.f32 %v1312, %v1104
        %v1315 = vadd.f32 %v1309, %v1313
        %v1316 = vadd.f32 %v1310, %v1314
        %s1317 = sld [smem:[#allocation7 + $0x16]]
        %v1318 = vstv %s1317
        %v1319 = vmul.f32 %v1318, %v1105
        %v1320 = vmul.f32 %v1318, %v1106
        %v1321 = vadd.f32 %v1315, %v1319
        %v1322 = vadd.f32 %v1316, %v1320
        %s1323 = sld [smem:[#allocation7 + $0x17]]
        %v1324 = vstv %s1323
        %v1325 = vmul.f32 %v1324, %v1107
        %v1326 = vmul.f32 %v1324, %v1108
        %v1327 = vadd.f32 %v1321, %v1325
        %v1328 = vadd.f32 %v1322, %v1326
        %s1329 = sld [smem:[#allocation8 + $0xc]]
        %v1330 = vstv %s1329
        %v1331 = vmul.f32 %v1330, %v1109
        %v1332 = vmul.f32 %v1330, %v1110
        %v1333 = vadd.f32 %v1331, 1.0
        %v1334 = vadd.f32 %v1332, 1.0
        %s1335 = sld [smem:[#allocation8 + $0xd]]
        %v1336 = vstv %s1335
        %v1337 = vmul.f32 %v1336, %v1101
        %v1338 = vmul.f32 %v1336, %v1102
        %v1339 = vadd.f32 %v1333, %v1337
        %v1340 = vadd.f32 %v1334, %v1338
        %s1341 = sld [smem:[#allocation8 + $0xe]]
        %v1342 = vstv %s1341
        %v1343 = vmul.f32 %v1342, %v1111
        %v1344 = vmul.f32 %v1342, %v1112
        %v1345 = vadd.f32 %v1339, %v1343
        %v1346 = vadd.f32 %v1340, %v1344
        %s1347 = sld [smem:[#allocation8 + $0xf]]
        %v1348 = vstv %s1347
        %v1349 = vmul.f32 %v1348, %v1105
        %v1350 = vmul.f32 %v1348, %v1106
        %v1351 = vadd.f32 %v1345, %v1349
        %v1352 = vadd.f32 %v1346, %v1350
        %v1353 = vrcp.pop %v1351
        %v1354 = vrcp.pop %v1352
        %v1355 = vmul.f32 %v1327, %v1353
        %v1356 = vmul.f32 %v1328, %v1354
        %v1357 = vadd.f32 %v1295, %v1355
        %v1358 = vadd.f32 %v1296, %v1356
        %s1359 = sld [smem:[#allocation7 + $0x18]]
        %s1360 = sld [smem:[#allocation7 + $0x19]]
        %v1361 = vstv %s1360
        %v1362 = vmul.f32 %v1361, %v1099
        %v1363 = vmul.f32 %v1361, %v1100
        %v1364 = vstv %s1359
        %v1365 = vadd.f32 %v1364, %v1362
        %v1366 = vadd.f32 %v1364, %v1363
        %s1367 = sld [smem:[#allocation7 + $0x1a]]
        %v1368 = vstv %s1367
        %v1369 = vmul.f32 %v1368, %v1101
        %v1370 = vmul.f32 %v1368, %v1102
        %v1371 = vadd.f32 %v1365, %v1369
        %v1372 = vadd.f32 %v1366, %v1370
        %s1373 = sld [smem:[#allocation7 + $0x1b]]
        %v1374 = vstv %s1373
        %v1375 = vmul.f32 %v1374, %v1103
        %v1376 = vmul.f32 %v1374, %v1104
        %v1377 = vadd.f32 %v1371, %v1375
        %v1378 = vadd.f32 %v1372, %v1376
        %s1379 = sld [smem:[#allocation7 + $0x1c]]
        %v1380 = vstv %s1379
        %v1381 = vmul.f32 %v1380, %v1105
        %v1382 = vmul.f32 %v1380, %v1106
        %v1383 = vadd.f32 %v1377, %v1381
        %v1384 = vadd.f32 %v1378, %v1382
        %s1385 = sld [smem:[#allocation7 + $0x1d]]
        %v1386 = vstv %s1385
        %v1387 = vmul.f32 %v1386, %v1107
        %v1388 = vmul.f32 %v1386, %v1108
        %v1389 = vadd.f32 %v1383, %v1387
        %v1390 = vadd.f32 %v1384, %v1388
        %s1391 = sld [smem:[#allocation8 + $0x10]]
        %v1392 = vstv %s1391
        %v1393 = vmul.f32 %v1392, %v1109
        %v1394 = vmul.f32 %v1392, %v1110
        %v1395 = vadd.f32 %v1393, 1.0
        %v1396 = vadd.f32 %v1394, 1.0
        %s1397 = sld [smem:[#allocation8 + $0x11]]
        %v1398 = vstv %s1397
        %v1399 = vmul.f32 %v1398, %v1101
        %v1400 = vmul.f32 %v1398, %v1102
        %v1401 = vadd.f32 %v1395, %v1399
        %v1402 = vadd.f32 %v1396, %v1400
        %s1403 = sld [smem:[#allocation8 + $0x12]]
        %v1404 = vstv %s1403
        %v1405 = vmul.f32 %v1404, %v1111
        %v1406 = vmul.f32 %v1404, %v1112
        %v1407 = vadd.f32 %v1401, %v1405
        %v1408 = vadd.f32 %v1402, %v1406
        %s1409 = sld [smem:[#allocation8 + $0x13]]
        %v1410 = vstv %s1409
        %v1411 = vmul.f32 %v1410, %v1105
        %v1412 = vmul.f32 %v1410, %v1106
        %v1413 = vadd.f32 %v1407, %v1411
        %v1414 = vadd.f32 %v1408, %v1412
        %v1415 = vrcp.pop %v1413
        %v1416 = vrcp.pop %v1414
        %v1417 = vmul.f32 %v1389, %v1415
        %v1418 = vmul.f32 %v1390, %v1416
        %v1419 = vadd.f32 %v1357, %v1417
        %v1420 = vadd.f32 %v1358, %v1418
        %v1423 = vcombine.low %v1419, %v1420
        %1425 = vst [vmem:[%s384] sm:$0xff] %v1423
        %p1426 = scmp.lt.s32.totalorder %s23, 1
        %s1427 = scalar_select %p1426, %s23, 1
        %s1428 = smul.addr %s1427, 2
        %s1429 = smul.addr %s1428, 4
        %s1430 = scalar_lea.vmem %s9, %s1429
        // Predicated region
        $region73: #{rational_basic_block_forward.1} parent=55 // pred_check
          %p1431 = pneg %p235
        $region74: #{rational_basic_block_forward.1} parent=55 // pred_check_branch
          %1433 = sbr.rel (%p1431) target = $region76
        $region75: #{rational_basic_block_forward.1} parent=55 // pred_region
          _
        $region76: #{rational_basic_block_forward.1} parent=55 // pred_fallthru
          _
      $region56: #{rational_basic_block_forward.1} parent=5 // pred_fallthru
        _
      %p1434 = scmp.le.s32.totalorder 2, %s18
      // Predicated region
      $region77: #{rational_basic_block_forward.1} parent=5 // pred_check
        %p1435 = pneg %p1434
      $region78: #{rational_basic_block_forward.1} parent=5 // pred_check_branch
        %1437 = sbr.rel (%p1435) target = $region80
      $region79: #{rational_basic_block_forward.1} parent=5 // pred_region
        %s1438 = ssub.s32 %s18, 2
        // Predicated region
        $region81: #{rational_basic_block_forward.1} parent=79 // pred_check
          %p1439 = pneg %p241
        $region82: #{rational_basic_block_forward.1} parent=79 // pred_check_branch
          %1441 = sbr.rel (%p1439) target = $region84
        $region83: #{rational_basic_block_forward.1} parent=79 // pred_region
          %p1442 = scmp.lt.s32.totalorder %s24, 1
          %s1443 = scalar_select %p1442, %s24, 1
          %s1444 = smul.addr %s1443, 2
          %s1445 = smul.addr %s1444, 4
          %s1446 = scalar_lea.vmem %s9, %s1445
        $region84: #{rational_basic_block_forward.1} parent=79 // pred_fallthru
          _
      $region80: #{rational_basic_block_forward.1} parent=5 // pred_fallthru
        _
    $region6: #{rational_basic_block_forward.1} parent=1 // loop_footer
      %s22 = sadd.s32 1, %s18
    $region7: #{rational_basic_block_forward.1} parent=1 // loop_footer_branch
      %17 = sbr.rel target = $region3
    $region8: #{rational_basic_block_forward.1} parent=1 // loop_exit
      _
    %1447 = vsyncpa [#allocation4], 1
    %s1448 = scalar_lea.sflag [#allocation4], 1
    %1449 = vsyncpa %s1448, 1
    %1450 = vsyncpa [#allocation6], 1
    %1451 = vsyncpa [#allocation9], 1

</llo_original>
